<compile_context>
chip_gen: v6e
topology: v6e:2x2x1
jax: 0.10.0
libtpu: 0.0.40
codegen_flags: <defaults>
</compile_context>

<pallas_src>
import jax
import jax.numpy as jnp
from jax.experimental import pallas as pl
from jax.experimental.pallas import tpu as pltpu

# ---- small, module-consistent sizes --------------------------------------
B = 2           # batch
T = 16          # number of mel frames (time)
N_MELS = 32     # n_mels (input feature dim)
N_CH = 128      # n_channels (multiple of 128 -> lane-dense)
N_LAYERS = 2    # n_mel_encoder_layer
K = 3           # k_size ('same' conv, dilation 1)
PAD = (K - 1) // 2

# Activations are staged in a zero-padded VMEM scratch. The interior starts at
# a sublane-aligned offset so the store is unmasked; the +/-1 tap loads are
# cheap shifted static slices. Rows just outside the interior stay zero and act
# as the conv 'same' padding for every layer / batch element.
SCRATCH_OFF = 8
SCRATCH_ROWS = SCRATCH_OFF + T + PAD


def mel_encoder_kernel(x_ref, wp_ref, bp_ref, wc_ref, bc_ref, o_ref, pad_ref):
    # Zero the scratch once; only the pad rows need to stay zero.
    pad_ref[...] = jnp.zeros_like(pad_ref)

    wp = wp_ref[...]                          # (N_MELS, N_CH) bf16
    bp = bp_ref[...]                          # (1, N_CH)      f32

    for b in range(B):                        # B == 2, fully unrolled
        # ---- mel_prenet: Linear -> ReLU -> Dropout(identity) -------------
        x = x_ref[b]                          # (T, N_MELS) f32
        h = jnp.dot(x.astype(jnp.bfloat16), wp,
                    preferred_element_type=jnp.float32) + bp
        h = jnp.maximum(h, 0.0)               # (T, N_CH) f32

        # ---- mel_encoder: residual [Conv1d(k=3,'same') -> ReLU -> Drop] ---
        for l in range(N_LAYERS):             # unrolled
            # stage activation between the zero pad rows (aligned store)
            pad_ref[pl.ds(SCRATCH_OFF, T), :] = h
            y = bc_ref[l]                     # (1, N_CH) conv bias, f32
            for j in range(K):                # taps x[t-1], x[t], x[t+1]
                tap = pad_ref[pl.ds(SCRATCH_OFF - PAD + j, T), :]
                y = y + jnp.dot(tap.astype(jnp.bfloat16), wc_ref[l, j],
                                preferred_element_type=jnp.float32)
            h = h + jnp.maximum(y, 0.0)       # residual connection

        o_ref[b] = h.astype(o_ref.dtype)      # (T, N_CH) lane-dense store


def mel_encoder(x, params):
    """x: (B, T, N_MELS) f32  ->  (B, T, N_CH) f32."""
    wp, bp, wc, bc = params
    vmem = lambda: pl.BlockSpec(memory_space=pltpu.MemorySpace.VMEM)
    return pl.pallas_call(
        mel_encoder_kernel,
        out_shape=jax.ShapeDtypeStruct((B, T, N_CH), jnp.float32),
        in_specs=[vmem() for _ in range(5)],
        out_specs=vmem(),
        scratch_shapes=[pltpu.VMEM((SCRATCH_ROWS, N_CH), jnp.float32)],
    )(x, wp.astype(jnp.bfloat16), bp, wc.astype(jnp.bfloat16), bc)


def reference(x, params):
    """Plain-JAX reference with the same bf16-operand / f32-accumulate math."""
    wp, bp, wc, bc = params
    wp_bf = wp.astype(jnp.bfloat16)
    wc_bf = wc.astype(jnp.bfloat16)

    def one(xb):                                       # xb: (T, N_MELS)
        h = jnp.dot(xb.astype(jnp.bfloat16), wp_bf,
                    preferred_element_type=jnp.float32) + bp
        h = jnp.maximum(h, 0.0)
        for l in range(N_LAYERS):
            hp = jnp.pad(h, ((PAD, PAD), (0, 0)))
            y = bc[l]
            for j in range(K):
                y = y + jnp.dot(hp[j:j + T].astype(jnp.bfloat16), wc_bf[l, j],
                                preferred_element_type=jnp.float32)
            h = h + jnp.maximum(y, 0.0)
        return h

    return jax.vmap(one)(x)


def init_params(key):
    ks = jax.random.split(key, 4)
    scale = 0.05
    wp = scale * jax.random.normal(ks[0], (N_MELS, N_CH), jnp.float32)
    bp = scale * jax.random.normal(ks[1], (1, N_CH), jnp.float32)
    wc = scale * jax.random.normal(ks[2], (N_LAYERS, K, N_CH, N_CH), jnp.float32)
    bc = scale * jax.random.normal(ks[3], (N_LAYERS, 1, N_CH), jnp.float32)
    return (wp, bp, wc, bc)


if __name__ == "__main__":
    key = jax.random.PRNGKey(0)
    pkey, xkey = jax.random.split(key)
    params = init_params(pkey)
    x = jax.random.normal(xkey, (B, T, N_MELS), jnp.float32)

    out = mel_encoder(x, params)
    out = jax.block_until_ready(out)

    ref = reference(x, params)
    assert out.shape == (B, T, N_CH)
    assert jnp.allclose(out, ref, atol=1e-3, rtol=1e-3), "mismatch vs reference"
    print("KERNEL_OK")
</pallas_src>

<mosaic_0001>
module attributes {stable_mosaic.version = 11 : i64} {
  func.func @mel_encoder_kernel(%arg0: memref<2x16x32xf32, #tpu.memory_space<vmem>>, %arg1: memref<32x128xbf16, #tpu.memory_space<vmem>>, %arg2: memref<1x128xf32, #tpu.memory_space<vmem>>, %arg3: memref<2x3x128x128xbf16, #tpu.memory_space<vmem>>, %arg4: memref<2x1x128xf32, #tpu.memory_space<vmem>>, %arg5: memref<2x16x128xf32, #tpu.memory_space<vmem>>, %arg6: memref<25x128xf32, #tpu.memory_space<vmem>>) attributes {dimension_semantics = [], scalar_prefetch = 0 : i64, scratch_operands = 1 : i64, tpu.core_type = #tpu.core_type<tc>} {
    %cst = arith.constant 0.000000e+00 : f32
    %0 = vector.broadcast %cst : f32 to vector<25x128xf32>
    %c0 = arith.constant 0 : index
    %c0_0 = arith.constant 0 : index
    %1 = vector.load %arg6[%c0, %c0_0] : memref<25x128xf32, #tpu.memory_space<vmem>>, vector<25x128xf32>
    tpu.vector_store %arg6[%c0, %c0_0], %0 {strides = array<i32>} : memref<25x128xf32, #tpu.memory_space<vmem>>, vector<25x128xf32>,
    %c0_1 = arith.constant 0 : index
    %c0_2 = arith.constant 0 : index
    %2 = vector.load %arg1[%c0_1, %c0_2] : memref<32x128xbf16, #tpu.memory_space<vmem>>, vector<32x128xbf16>
    %c0_3 = arith.constant 0 : index
    %c0_4 = arith.constant 0 : index
    %3 = vector.load %arg2[%c0_3, %c0_4] : memref<1x128xf32, #tpu.memory_space<vmem>>, vector<1x128xf32>
    %c0_5 = arith.constant 0 : index
    %c0_6 = arith.constant 0 : index
    %c0_7 = arith.constant 0 : index
    %4 = vector.load %arg0[%c0_5, %c0_6, %c0_7] : memref<2x16x32xf32, #tpu.memory_space<vmem>>, vector<1x16x32xf32>
    %5 = vector.shape_cast %4 : vector<1x16x32xf32> to vector<16x32xf32>
    %6 = arith.truncf %5 : vector<16x32xf32> to vector<16x32xbf16>
    %cst_8 = arith.constant dense<0.000000e+00> : vector<16x128xf32>
    %7 = tpu.matmul %6, %2, %cst_8 {dimension_numbers = #tpu.dot_dimension_numbers<[1], [0], [0], [1], [0, 0, 1, 1], [], []>} : vector<16x32xbf16>, vector<32x128xbf16>, vector<16x128xf32> -> vector<16x128xf32>
    %8 = vector.broadcast %3 : vector<1x128xf32> to vector<16x128xf32>
    %9 = arith.addf %7, %8 : vector<16x128xf32>
    %cst_9 = arith.constant 0.000000e+00 : f32
    %10 = vector.broadcast %cst_9 : f32 to vector<16x128xf32>
    %11 = arith.maximumf %9, %10 : vector<16x128xf32>
    %c8 = arith.constant 8 : index
    %c0_10 = arith.constant 0 : index
    %12 = vector.load %arg6[%c8, %c0_10] : memref<25x128xf32, #tpu.memory_space<vmem>>, vector<16x128xf32>
    tpu.vector_store %arg6[%c8, %c0_10], %11 {strides = array<i32>} : memref<25x128xf32, #tpu.memory_space<vmem>>, vector<16x128xf32>,
    %c0_11 = arith.constant 0 : index
    %c0_12 = arith.constant 0 : index
    %c0_13 = arith.constant 0 : index
    %13 = vector.load %arg4[%c0_11, %c0_12, %c0_13] : memref<2x1x128xf32, #tpu.memory_space<vmem>>, vector<1x1x128xf32>
    %14 = vector.shape_cast %13 : vector<1x1x128xf32> to vector<1x128xf32>
    %c7 = arith.constant 7 : index
    %c0_14 = arith.constant 0 : index
    %15 = vector.load %arg6[%c7, %c0_14] : memref<25x128xf32, #tpu.memory_space<vmem>>, vector<16x128xf32>
    %16 = arith.truncf %15 : vector<16x128xf32> to vector<16x128xbf16>
    %c0_15 = arith.constant 0 : index
    %c0_16 = arith.constant 0 : index
    %c0_17 = arith.constant 0 : index
    %c0_18 = arith.constant 0 : index
    %17 = vector.load %arg3[%c0_15, %c0_16, %c0_17, %c0_18] : memref<2x3x128x128xbf16, #tpu.memory_space<vmem>>, vector<1x1x128x128xbf16>
    %18 = vector.shape_cast %17 : vector<1x1x128x128xbf16> to vector<128x128xbf16>
    %cst_19 = arith.constant dense<0.000000e+00> : vector<16x128xf32>
    %19 = tpu.matmul %16, %18, %cst_19 {dimension_numbers = #tpu.dot_dimension_numbers<[1], [0], [0], [1], [0, 0, 1, 1], [], []>} : vector<16x128xbf16>, vector<128x128xbf16>, vector<16x128xf32> -> vector<16x128xf32>
    %20 = vector.broadcast %14 : vector<1x128xf32> to vector<16x128xf32>
    %21 = arith.addf %20, %19 : vector<16x128xf32>
    %c8_20 = arith.constant 8 : index
    %c0_21 = arith.constant 0 : index
    %22 = vector.load %arg6[%c8_20, %c0_21] : memref<25x128xf32, #tpu.memory_space<vmem>>, vector<16x128xf32>
    %23 = arith.truncf %22 : vector<16x128xf32> to vector<16x128xbf16>
    %c0_22 = arith.constant 0 : index
    %c1 = arith.constant 1 : index
    %c0_23 = arith.constant 0 : index
    %c0_24 = arith.constant 0 : index
    %24 = vector.load %arg3[%c0_22, %c1, %c0_23, %c0_24] : memref<2x3x128x128xbf16, #tpu.memory_space<vmem>>, vector<1x1x128x128xbf16>
    %25 = vector.shape_cast %24 : vector<1x1x128x128xbf16> to vector<128x128xbf16>
    %cst_25 = arith.constant dense<0.000000e+00> : vector<16x128xf32>
    %26 = tpu.matmul %23, %25, %cst_25 {dimension_numbers = #tpu.dot_dimension_numbers<[1], [0], [0], [1], [0, 0, 1, 1], [], []>} : vector<16x128xbf16>, vector<128x128xbf16>, vector<16x128xf32> -> vector<16x128xf32>
    %27 = arith.addf %21, %26 : vector<16x128xf32>
    %c9 = arith.constant 9 : index
    %c0_26 = arith.constant 0 : index
    %28 = vector.load %arg6[%c9, %c0_26] : memref<25x128xf32, #tpu.memory_space<vmem>>, vector<16x128xf32>
    %29 = arith.truncf %28 : vector<16x128xf32> to vector<16x128xbf16>
    %c0_27 = arith.constant 0 : index
    %c2 = arith.constant 2 : index
    %c0_28 = arith.constant 0 : index
    %c0_29 = arith.constant 0 : index
    %30 = vector.load %arg3[%c0_27, %c2, %c0_28, %c0_29] : memref<2x3x128x128xbf16, #tpu.memory_space<vmem>>, vector<1x1x128x128xbf16>
    %31 = vector.shape_cast %30 : vector<1x1x128x128xbf16> to vector<128x128xbf16>
    %cst_30 = arith.constant dense<0.000000e+00> : vector<16x128xf32>
    %32 = tpu.matmul %29, %31, %cst_30 {dimension_numbers = #tpu.dot_dimension_numbers<[1], [0], [0], [1], [0, 0, 1, 1], [], []>} : vector<16x128xbf16>, vector<128x128xbf16>, vector<16x128xf32> -> vector<16x128xf32>
    %33 = arith.addf %27, %32 : vector<16x128xf32>
    %cst_31 = arith.constant 0.000000e+00 : f32
    %34 = vector.broadcast %cst_31 : f32 to vector<16x128xf32>
    %35 = arith.maximumf %33, %34 : vector<16x128xf32>
    %36 = arith.addf %11, %35 : vector<16x128xf32>
    %c8_32 = arith.constant 8 : index
    %c0_33 = arith.constant 0 : index
    %37 = vector.load %arg6[%c8_32, %c0_33] : memref<25x128xf32, #tpu.memory_space<vmem>>, vector<16x128xf32>
    tpu.vector_store %arg6[%c8_32, %c0_33], %36 {strides = array<i32>} : memref<25x128xf32, #tpu.memory_space<vmem>>, vector<16x128xf32>,
    %c1_34 = arith.constant 1 : index
    %c0_35 = arith.constant 0 : index
    %c0_36 = arith.constant 0 : index
    %38 = vector.load %arg4[%c1_34, %c0_35, %c0_36] : memref<2x1x128xf32, #tpu.memory_space<vmem>>, vector<1x1x128xf32>
    %39 = vector.shape_cast %38 : vector<1x1x128xf32> to vector<1x128xf32>
    %c7_37 = arith.constant 7 : index
    %c0_38 = arith.constant 0 : index
    %40 = vector.load %arg6[%c7_37, %c0_38] : memref<25x128xf32, #tpu.memory_space<vmem>>, vector<16x128xf32>
    %41 = arith.truncf %40 : vector<16x128xf32> to vector<16x128xbf16>
    %c1_39 = arith.constant 1 : index
    %c0_40 = arith.constant 0 : index
    %c0_41 = arith.constant 0 : index
    %c0_42 = arith.constant 0 : index
    %42 = vector.load %arg3[%c1_39, %c0_40, %c0_41, %c0_42] : memref<2x3x128x128xbf16, #tpu.memory_space<vmem>>, vector<1x1x128x128xbf16>
    %43 = vector.shape_cast %42 : vector<1x1x128x128xbf16> to vector<128x128xbf16>
    %cst_43 = arith.constant dense<0.000000e+00> : vector<16x128xf32>
    %44 = tpu.matmul %41, %43, %cst_43 {dimension_numbers = #tpu.dot_dimension_numbers<[1], [0], [0], [1], [0, 0, 1, 1], [], []>} : vector<16x128xbf16>, vector<128x128xbf16>, vector<16x128xf32> -> vector<16x128xf32>
    %45 = vector.broadcast %39 : vector<1x128xf32> to vector<16x128xf32>
    %46 = arith.addf %45, %44 : vector<16x128xf32>
    %c8_44 = arith.constant 8 : index
    %c0_45 = arith.constant 0 : index
    %47 = vector.load %arg6[%c8_44, %c0_45] : memref<25x128xf32, #tpu.memory_space<vmem>>, vector<16x128xf32>
    %48 = arith.truncf %47 : vector<16x128xf32> to vector<16x128xbf16>
    %c1_46 = arith.constant 1 : index
    %c1_47 = arith.constant 1 : index
    %c0_48 = arith.constant 0 : index
    %c0_49 = arith.constant 0 : index
    %49 = vector.load %arg3[%c1_46, %c1_47, %c0_48, %c0_49] : memref<2x3x128x128xbf16, #tpu.memory_space<vmem>>, vector<1x1x128x128xbf16>
    %50 = vector.shape_cast %49 : vector<1x1x128x128xbf16> to vector<128x128xbf16>
    %cst_50 = arith.constant dense<0.000000e+00> : vector<16x128xf32>
    %51 = tpu.matmul %48, %50, %cst_50 {dimension_numbers = #tpu.dot_dimension_numbers<[1], [0], [0], [1], [0, 0, 1, 1], [], []>} : vector<16x128xbf16>, vector<128x128xbf16>, vector<16x128xf32> -> vector<16x128xf32>
    %52 = arith.addf %46, %51 : vector<16x128xf32>
    %c9_51 = arith.constant 9 : index
    %c0_52 = arith.constant 0 : index
    %53 = vector.load %arg6[%c9_51, %c0_52] : memref<25x128xf32, #tpu.memory_space<vmem>>, vector<16x128xf32>
    %54 = arith.truncf %53 : vector<16x128xf32> to vector<16x128xbf16>
    %c1_53 = arith.constant 1 : index
    %c2_54 = arith.constant 2 : index
    %c0_55 = arith.constant 0 : index
    %c0_56 = arith.constant 0 : index
    %55 = vector.load %arg3[%c1_53, %c2_54, %c0_55, %c0_56] : memref<2x3x128x128xbf16, #tpu.memory_space<vmem>>, vector<1x1x128x128xbf16>
    %56 = vector.shape_cast %55 : vector<1x1x128x128xbf16> to vector<128x128xbf16>
    %cst_57 = arith.constant dense<0.000000e+00> : vector<16x128xf32>
    %57 = tpu.matmul %54, %56, %cst_57 {dimension_numbers = #tpu.dot_dimension_numbers<[1], [0], [0], [1], [0, 0, 1, 1], [], []>} : vector<16x128xbf16>, vector<128x128xbf16>, vector<16x128xf32> -> vector<16x128xf32>
    %58 = arith.addf %52, %57 : vector<16x128xf32>
    %cst_58 = arith.constant 0.000000e+00 : f32
    %59 = vector.broadcast %cst_58 : f32 to vector<16x128xf32>
    %60 = arith.maximumf %58, %59 : vector<16x128xf32>
    %61 = arith.addf %36, %60 : vector<16x128xf32>
    %c0_59 = arith.constant 0 : index
    %c0_60 = arith.constant 0 : index
    %c0_61 = arith.constant 0 : index
    %62 = vector.load %arg5[%c0_59, %c0_60, %c0_61] : memref<2x16x128xf32, #tpu.memory_space<vmem>>, vector<1x16x128xf32>
    %63 = vector.shape_cast %62 : vector<1x16x128xf32> to vector<16x128xf32>
    %64 = vector.shape_cast %61 : vector<16x128xf32> to vector<1x16x128xf32>
    tpu.vector_store %arg5[%c0_59, %c0_60, %c0_61], %64 {strides = array<i32>} : memref<2x16x128xf32, #tpu.memory_space<vmem>>, vector<1x16x128xf32>,
    %c1_62 = arith.constant 1 : index
    %c0_63 = arith.constant 0 : index
    %c0_64 = arith.constant 0 : index
    %65 = vector.load %arg0[%c1_62, %c0_63, %c0_64] : memref<2x16x32xf32, #tpu.memory_space<vmem>>, vector<1x16x32xf32>
    %66 = vector.shape_cast %65 : vector<1x16x32xf32> to vector<16x32xf32>
    %67 = arith.truncf %66 : vector<16x32xf32> to vector<16x32xbf16>
    %cst_65 = arith.constant dense<0.000000e+00> : vector<16x128xf32>
    %68 = tpu.matmul %67, %2, %cst_65 {dimension_numbers = #tpu.dot_dimension_numbers<[1], [0], [0], [1], [0, 0, 1, 1], [], []>} : vector<16x32xbf16>, vector<32x128xbf16>, vector<16x128xf32> -> vector<16x128xf32>
    %69 = vector.broadcast %3 : vector<1x128xf32> to vector<16x128xf32>
    %70 = arith.addf %68, %69 : vector<16x128xf32>
    %cst_66 = arith.constant 0.000000e+00 : f32
    %71 = vector.broadcast %cst_66 : f32 to vector<16x128xf32>
    %72 = arith.maximumf %70, %71 : vector<16x128xf32>
    %c8_67 = arith.constant 8 : index
    %c0_68 = arith.constant 0 : index
    %73 = vector.load %arg6[%c8_67, %c0_68] : memref<25x128xf32, #tpu.memory_space<vmem>>, vector<16x128xf32>
    tpu.vector_store %arg6[%c8_67, %c0_68], %72 {strides = array<i32>} : memref<25x128xf32, #tpu.memory_space<vmem>>, vector<16x128xf32>,
    %c0_69 = arith.constant 0 : index
    %c0_70 = arith.constant 0 : index
    %c0_71 = arith.constant 0 : index
    %74 = vector.load %arg4[%c0_69, %c0_70, %c0_71] : memref<2x1x128xf32, #tpu.memory_space<vmem>>, vector<1x1x128xf32>
    %75 = vector.shape_cast %74 : vector<1x1x128xf32> to vector<1x128xf32>
    %c7_72 = arith.constant 7 : index
    %c0_73 = arith.constant 0 : index
    %76 = vector.load %arg6[%c7_72, %c0_73] : memref<25x128xf32, #tpu.memory_space<vmem>>, vector<16x128xf32>
    %77 = arith.truncf %76 : vector<16x128xf32> to vector<16x128xbf16>
    %c0_74 = arith.constant 0 : index
    %c0_75 = arith.constant 0 : index
    %c0_76 = arith.constant 0 : index
    %c0_77 = arith.constant 0 : index
    %78 = vector.load %arg3[%c0_74, %c0_75, %c0_76, %c0_77] : memref<2x3x128x128xbf16, #tpu.memory_space<vmem>>, vector<1x1x128x128xbf16>
    %79 = vector.shape_cast %78 : vector<1x1x128x128xbf16> to vector<128x128xbf16>
    %cst_78 = arith.constant dense<0.000000e+00> : vector<16x128xf32>
    %80 = tpu.matmul %77, %79, %cst_78 {dimension_numbers = #tpu.dot_dimension_numbers<[1], [0], [0], [1], [0, 0, 1, 1], [], []>} : vector<16x128xbf16>, vector<128x128xbf16>, vector<16x128xf32> -> vector<16x128xf32>
    %81 = vector.broadcast %75 : vector<1x128xf32> to vector<16x128xf32>
    %82 = arith.addf %81, %80 : vector<16x128xf32>
    %c8_79 = arith.constant 8 : index
    %c0_80 = arith.constant 0 : index
    %83 = vector.load %arg6[%c8_79, %c0_80] : memref<25x128xf32, #tpu.memory_space<vmem>>, vector<16x128xf32>
    %84 = arith.truncf %83 : vector<16x128xf32> to vector<16x128xbf16>
    %c0_81 = arith.constant 0 : index
    %c1_82 = arith.constant 1 : index
    %c0_83 = arith.constant 0 : index
    %c0_84 = arith.constant 0 : index
    %85 = vector.load %arg3[%c0_81, %c1_82, %c0_83, %c0_84] : memref<2x3x128x128xbf16, #tpu.memory_space<vmem>>, vector<1x1x128x128xbf16>
    %86 = vector.shape_cast %85 : vector<1x1x128x128xbf16> to vector<128x128xbf16>
    %cst_85 = arith.constant dense<0.000000e+00> : vector<16x128xf32>
    %87 = tpu.matmul %84, %86, %cst_85 {dimension_numbers = #tpu.dot_dimension_numbers<[1], [0], [0], [1], [0, 0, 1, 1], [], []>} : vector<16x128xbf16>, vector<128x128xbf16>, vector<16x128xf32> -> vector<16x128xf32>
    %88 = arith.addf %82, %87 : vector<16x128xf32>
    %c9_86 = arith.constant 9 : index
    %c0_87 = arith.constant 0 : index
    %89 = vector.load %arg6[%c9_86, %c0_87] : memref<25x128xf32, #tpu.memory_space<vmem>>, vector<16x128xf32>
    %90 = arith.truncf %89 : vector<16x128xf32> to vector<16x128xbf16>
    %c0_88 = arith.constant 0 : index
    %c2_89 = arith.constant 2 : index
    %c0_90 = arith.constant 0 : index
    %c0_91 = arith.constant 0 : index
    %91 = vector.load %arg3[%c0_88, %c2_89, %c0_90, %c0_91] : memref<2x3x128x128xbf16, #tpu.memory_space<vmem>>, vector<1x1x128x128xbf16>
    %92 = vector.shape_cast %91 : vector<1x1x128x128xbf16> to vector<128x128xbf16>
    %cst_92 = arith.constant dense<0.000000e+00> : vector<16x128xf32>
    %93 = tpu.matmul %90, %92, %cst_92 {dimension_numbers = #tpu.dot_dimension_numbers<[1], [0], [0], [1], [0, 0, 1, 1], [], []>} : vector<16x128xbf16>, vector<128x128xbf16>, vector<16x128xf32> -> vector<16x128xf32>
    %94 = arith.addf %88, %93 : vector<16x128xf32>
    %cst_93 = arith.constant 0.000000e+00 : f32
    %95 = vector.broadcast %cst_93 : f32 to vector<16x128xf32>
    %96 = arith.maximumf %94, %95 : vector<16x128xf32>
    %97 = arith.addf %72, %96 : vector<16x128xf32>
    %c8_94 = arith.constant 8 : index
    %c0_95 = arith.constant 0 : index
    %98 = vector.load %arg6[%c8_94, %c0_95] : memref<25x128xf32, #tpu.memory_space<vmem>>, vector<16x128xf32>
    tpu.vector_store %arg6[%c8_94, %c0_95], %97 {strides = array<i32>} : memref<25x128xf32, #tpu.memory_space<vmem>>, vector<16x128xf32>,
    %c1_96 = arith.constant 1 : index
    %c0_97 = arith.constant 0 : index
    %c0_98 = arith.constant 0 : index
    %99 = vector.load %arg4[%c1_96, %c0_97, %c0_98] : memref<2x1x128xf32, #tpu.memory_space<vmem>>, vector<1x1x128xf32>
    %100 = vector.shape_cast %99 : vector<1x1x128xf32> to vector<1x128xf32>
    %c7_99 = arith.constant 7 : index
    %c0_100 = arith.constant 0 : index
    %101 = vector.load %arg6[%c7_99, %c0_100] : memref<25x128xf32, #tpu.memory_space<vmem>>, vector<16x128xf32>
    %102 = arith.truncf %101 : vector<16x128xf32> to vector<16x128xbf16>
    %c1_101 = arith.constant 1 : index
    %c0_102 = arith.constant 0 : index
    %c0_103 = arith.constant 0 : index
    %c0_104 = arith.constant 0 : index
    %103 = vector.load %arg3[%c1_101, %c0_102, %c0_103, %c0_104] : memref<2x3x128x128xbf16, #tpu.memory_space<vmem>>, vector<1x1x128x128xbf16>
    %104 = vector.shape_cast %103 : vector<1x1x128x128xbf16> to vector<128x128xbf16>
    %cst_105 = arith.constant dense<0.000000e+00> : vector<16x128xf32>
    %105 = tpu.matmul %102, %104, %cst_105 {dimension_numbers = #tpu.dot_dimension_numbers<[1], [0], [0], [1], [0, 0, 1, 1], [], []>} : vector<16x128xbf16>, vector<128x128xbf16>, vector<16x128xf32> -> vector<16x128xf32>
    %106 = vector.broadcast %100 : vector<1x128xf32> to vector<16x128xf32>
    %107 = arith.addf %106, %105 : vector<16x128xf32>
    %c8_106 = arith.constant 8 : index
    %c0_107 = arith.constant 0 : index
    %108 = vector.load %arg6[%c8_106, %c0_107] : memref<25x128xf32, #tpu.memory_space<vmem>>, vector<16x128xf32>
    %109 = arith.truncf %108 : vector<16x128xf32> to vector<16x128xbf16>
    %c1_108 = arith.constant 1 : index
    %c1_109 = arith.constant 1 : index
    %c0_110 = arith.constant 0 : index
    %c0_111 = arith.constant 0 : index
    %110 = vector.load %arg3[%c1_108, %c1_109, %c0_110, %c0_111] : memref<2x3x128x128xbf16, #tpu.memory_space<vmem>>, vector<1x1x128x128xbf16>
    %111 = vector.shape_cast %110 : vector<1x1x128x128xbf16> to vector<128x128xbf16>
    %cst_112 = arith.constant dense<0.000000e+00> : vector<16x128xf32>
    %112 = tpu.matmul %109, %111, %cst_112 {dimension_numbers = #tpu.dot_dimension_numbers<[1], [0], [0], [1], [0, 0, 1, 1], [], []>} : vector<16x128xbf16>, vector<128x128xbf16>, vector<16x128xf32> -> vector<16x128xf32>
    %113 = arith.addf %107, %112 : vector<16x128xf32>
    %c9_113 = arith.constant 9 : index
    %c0_114 = arith.constant 0 : index
    %114 = vector.load %arg6[%c9_113, %c0_114] : memref<25x128xf32, #tpu.memory_space<vmem>>, vector<16x128xf32>
    %115 = arith.truncf %114 : vector<16x128xf32> to vector<16x128xbf16>
    %c1_115 = arith.constant 1 : index
    %c2_116 = arith.constant 2 : index
    %c0_117 = arith.constant 0 : index
    %c0_118 = arith.constant 0 : index
    %116 = vector.load %arg3[%c1_115, %c2_116, %c0_117, %c0_118] : memref<2x3x128x128xbf16, #tpu.memory_space<vmem>>, vector<1x1x128x128xbf16>
    %117 = vector.shape_cast %116 : vector<1x1x128x128xbf16> to vector<128x128xbf16>
    %cst_119 = arith.constant dense<0.000000e+00> : vector<16x128xf32>
    %118 = tpu.matmul %115, %117, %cst_119 {dimension_numbers = #tpu.dot_dimension_numbers<[1], [0], [0], [1], [0, 0, 1, 1], [], []>} : vector<16x128xbf16>, vector<128x128xbf16>, vector<16x128xf32> -> vector<16x128xf32>
    %119 = arith.addf %113, %118 : vector<16x128xf32>
    %cst_120 = arith.constant 0.000000e+00 : f32
    %120 = vector.broadcast %cst_120 : f32 to vector<16x128xf32>
    %121 = arith.maximumf %119, %120 : vector<16x128xf32>
    %122 = arith.addf %97, %121 : vector<16x128xf32>
    %c1_121 = arith.constant 1 : index
    %c0_122 = arith.constant 0 : index
    %c0_123 = arith.constant 0 : index
    %123 = vector.load %arg5[%c1_121, %c0_122, %c0_123] : memref<2x16x128xf32, #tpu.memory_space<vmem>>, vector<1x16x128xf32>
    %124 = vector.shape_cast %123 : vector<1x16x128xf32> to vector<16x128xf32>
    %125 = vector.shape_cast %122 : vector<16x128xf32> to vector<1x16x128xf32>
    tpu.vector_store %arg5[%c1_121, %c0_122, %c0_123], %125 {strides = array<i32>} : memref<2x16x128xf32, #tpu.memory_space<vmem>>, vector<1x16x128xf32>,
    return
  }
}

</mosaic_0001>

<llo_original>
// kernel: tpu_custom_call.1
$region0: #{tpu_custom_call.1}
  #allocation0 [shape = 'u32[]', space=smem, size = 0x4, offset = 0x4, fixed_abs, tag = 'smem constant byte address 0x4 - core index']
  #allocation1 [shape = 'u32[144,128]{1,0:T(1,128)}', space=vmem, size = 0x12000, scoped, tag = 'internal scratch']
  #allocation2 [shape = 'f32[25,128]{1,0:T(8,128)}', space=vmem, size = 0x4000, scoped, tag = 'scratch operand']
  %s0 = inlined_call_operand.hbm [shape: f32[2,16,32], index: 0, kind: input, shape index: {}]
  %s1 = inlined_call_operand.hbm [shape: bf16[32,128], index: 1, kind: input, shape index: {}]
  %s2 = inlined_call_operand.vmem [shape: f32[1,128], index: 2, kind: input, shape index: {}]
  %s3 = inlined_call_operand.hbm [shape: bf16[2,3,128,128], index: 3, kind: input, shape index: {}]
  %s4 = inlined_call_operand.vmem [shape: f32[2,1,128], index: 4, kind: input, shape index: {}]
  %s5 = inlined_call_operand.hbm [shape: f32[2,16,128], index: 5, kind: output, shape index: {}]
  %s6 = sld [smem:[#allocation0]]
  $region42: #{tpu_custom_call.1} parent=0
    _
  %s8 = ssub.s32 1, %s6
  %s9 = scalar_select 0, %s8, %s6
  $region1: #{tpu_custom_call.1} parent=0
    #allocation3 [shape = 'u8[16384]{0}', space=vmem, size = 0x4000, scoped, tag = 'input window, operand 0, single buffered']
    #allocation4 [shape = 's32[1]{0}', space=sflag, size = 0x4, scoped, tag = 'scoped memory for tpu_custom_call.1']
    #allocation5 [shape = 's32[1]{0}', space=sflag, size = 0x4, scoped, tag = 'scoped memory for tpu_custom_call.1']
    #allocation6 [shape = 'u8[8192]{0}', space=vmem, size = 0x2000, scoped, tag = 'input window, operand 1, single buffered']
    #allocation7 [shape = 's32[1]{0}', space=sflag, size = 0x4, scoped, tag = 'scoped memory for tpu_custom_call.1']
    #allocation8 [shape = 'u8[196608]{0}', space=vmem, size = 0x30000, scoped, tag = 'input window, operand 3, single buffered']
    #allocation9 [shape = 'u8[16384]{0}', space=vmem, size = 0x4000, scoped, tag = 'output window, operand 0, single buffered']
    %10 = vsyncpa [#allocation4], 0
    %11 = vsyncpa [#allocation7], 0
    %12 = vsyncpa [#allocation5], 0
    // Predicated region
    $region2: #{tpu_custom_call.1} parent=1 // pred_check
      _
    $region3: #{tpu_custom_call.1} parent=1 // pred_check_branch
      %14 = sbr.rel (0) target = $region5
    $region4: #{tpu_custom_call.1} parent=1 // pred_region
      %s16 = ssub.s32 512, 512
      %17 = vsyncadd [#allocation4], %s16
      %s18 = sshll.u32 [#allocation3], 4
      %s19 = int_to_ptr.vmem [resolvable:$true] %s18
      %24 = dma.hbm_to_vmem [thread:$0]  %s0, 512, %s19, [#allocation4], 128, 128, 8
    $region5: #{tpu_custom_call.1} parent=1 // pred_fallthru
      _
    // Predicated region
    $region6: #{tpu_custom_call.1} parent=1 // pred_check
      _
    $region7: #{tpu_custom_call.1} parent=1 // pred_check_branch
      %26 = sbr.rel (0) target = $region9
    $region8: #{tpu_custom_call.1} parent=1 // pred_region
      %s28 = ssub.s32 256, 256
      %29 = vsyncadd [#allocation7], %s28
      %s30 = sshll.u32 [#allocation6], 4
      %s31 = int_to_ptr.vmem [resolvable:$true] %s30
      %36 = dma.hbm_to_vmem [thread:$0]  %s1, 256, %s31, [#allocation7], 64, 64, 4
    $region9: #{tpu_custom_call.1} parent=1 // pred_fallthru
      _
    // Predicated region
    $region10: #{tpu_custom_call.1} parent=1 // pred_check
      _
    $region11: #{tpu_custom_call.1} parent=1 // pred_check_branch
      %38 = sbr.rel (0) target = $region13
    $region12: #{tpu_custom_call.1} parent=1 // pred_region
      _
    $region13: #{tpu_custom_call.1} parent=1 // pred_fallthru
      _
    // Predicated region
    $region14: #{tpu_custom_call.1} parent=1 // pred_check
      _
    $region15: #{tpu_custom_call.1} parent=1 // pred_check_branch
      %40 = sbr.rel (0) target = $region17
    $region16: #{tpu_custom_call.1} parent=1 // pred_region
      %s42 = ssub.s32 6144, 6144
      %43 = vsyncadd [#allocation7], %s42
      %s44 = sshll.u32 [#allocation8], 4
      %s45 = int_to_ptr.vmem [resolvable:$true] %s44
      %50 = dma.hbm_to_vmem [thread:$0]  %s3, 6144, %s45, [#allocation7], 64, 64, 4
    $region17: #{tpu_custom_call.1} parent=1 // pred_fallthru
      _
    // Predicated region
    $region18: #{tpu_custom_call.1} parent=1 // pred_check
      _
    $region19: #{tpu_custom_call.1} parent=1 // pred_check_branch
      %52 = sbr.rel (0) target = $region21
    $region20: #{tpu_custom_call.1} parent=1 // pred_region
      _
    $region21: #{tpu_custom_call.1} parent=1 // pred_fallthru
      _
    // Predicated region
    $region22: #{tpu_custom_call.1} parent=1 // pred_check
      _
    $region23: #{tpu_custom_call.1} parent=1 // pred_check_branch
      %54 = sbr.rel (0) target = $region25
    $region24: #{tpu_custom_call.1} parent=1 // pred_region
      %55 = dma.done [#allocation4], 512
    $region25: #{tpu_custom_call.1} parent=1 // pred_fallthru
      _
    // Predicated region
    $region26: #{tpu_custom_call.1} parent=1 // pred_check
      _
    $region27: #{tpu_custom_call.1} parent=1 // pred_check_branch
      %57 = sbr.rel (0) target = $region29
    $region28: #{tpu_custom_call.1} parent=1 // pred_region
      %58 = dma.done [#allocation7], 256
    $region29: #{tpu_custom_call.1} parent=1 // pred_fallthru
      _
    // Predicated region
    $region30: #{tpu_custom_call.1} parent=1 // pred_check
      _
    $region31: #{tpu_custom_call.1} parent=1 // pred_check_branch
      %60 = sbr.rel (0) target = $region33
    $region32: #{tpu_custom_call.1} parent=1 // pred_region
      %61 = dma.done [#allocation7], 6144
    $region33: #{tpu_custom_call.1} parent=1 // pred_fallthru
      _
    %63 = vst [vmem:[#allocation2] sm:$0xff] 0.0
    %64 = vst [vmem:[#allocation2 + $0x8] sm:$0xff] 0.0
    %65 = vst [vmem:[#allocation2 + $0x10] sm:$0xff] 0.0
    %66 = vst [vmem:[#allocation2 + $0x18] sm:$0x1] 0.0
    %v67 = vld [vmem:[#allocation6] sm:$0xf]
    %v68 = vld [vmem:[#allocation6 + $0x4] sm:$0xf]
    %v69 = vld [vmem:[#allocation6 + $0x8] sm:$0xf]
    %v70 = vld [vmem:[#allocation6 + $0xc] sm:$0xf]
    %v71 = vld [vmem:[%s2] sm:$0x1]
    %v72 = vld [vmem:[#allocation3] sm:$0xff]
    %v73 = vld [vmem:[#allocation3 + $0x8] sm:$0xff]
    %v74 = vpack.c.bf16 %v73, %v72
    %v76 = vlaneseq
    %v77 = vshrl.u32 %v76, 7
    %v78 = vsub.s32 0, %v77
    %v79 = vrot.slane %v71, %v78
    %v85 = vunpack.c.l.b16 %v67
    %v86 = vunpack.c.l.b16 %v68
    %v87 = vunpack.c.l.b16 %v69
    %v88 = vunpack.c.l.b16 %v70
    %v89 = vpack.c.b16 %v86, %v85
    %v90 = vpack.c.b16 %v88, %v87
    %vm93 = vcmask 261120
    %v95 = vsel %vm93, %v74, 0
    %97 = vmatprep.subr.bf16.mxu0 0
    %98 = vmatpush1.bf16.msra.mxu0 0
    %99 = vmatprep.subr.bf16.mxu0 0
    %100 = vmatpush1.bf16.msra.mxu0 0
    %101 = vmatprep.subr.bf16.mxu0 0
    %102 = vmatpush1.bf16.msra.mxu0 0
    %103 = vmatprep.subr.bf16.mxu0 0
    %104 = vmatpush1.bf16.msra.mxu0 0
    %105 = vmatprep.subr.bf16.mxu0 0
    %106 = vmatpush1.bf16.msra.mxu0 0
    %107 = vmatprep.subr.bf16.mxu0 0
    %108 = vmatpush1.bf16.msra.mxu0 0
    %109 = vmatprep.subr.bf16.mxu0 0
    %110 = vmatpush1.bf16.msra.mxu0 %v90
    %111 = vmatprep.subr.bf16.mxu0 0
    %112 = vmatpush1.bf16.msra.mxu0 %v89
    %113 = vmatprep.subr.bf16.mxu0 0
    %114 = vmatpush2.bf16.msra.mxu0 0
    %115 = vmatprep.subr.bf16.mxu0 0
    %116 = vmatpush2.bf16.msra.mxu0 0
    %117 = vmatprep.subr.bf16.mxu0 0
    %118 = vmatpush2.bf16.msra.mxu0 0
    %119 = vmatprep.subr.bf16.mxu0 0
    %120 = vmatpush2.bf16.msra.mxu0 0
    %121 = vmatprep.subr.bf16.mxu0 0
    %122 = vmatpush2.bf16.msra.mxu0 0
    %123 = vmatprep.subr.bf16.mxu0 0
    %124 = vmatpush2.bf16.msra.mxu0 0
    %125 = vmatprep.subr.bf16.mxu0 0
    %126 = vmatpush2.bf16.msra.mxu0 0
    %127 = vmatprep.subr.bf16.mxu0 0
    %128 = vmatpush2.bf16.msra.mxu0 0
    %129 = vmatprep.mubr.bf16.mxu0 0
    %130 = vmatmul.mubr.bf16.gmra.mxu0 %v95
    %v131 = vpop.f32.mrf.mxu0
    %v132 = vadd.f32 %v79, %v131
    %v133 = vpop.f32.mrf.mxu0
    %v134 = vpop.f32.mrf.mxu0
    %v135 = vadd.f32 %v79, %v134
    %v136 = vpop.f32.mrf.mxu0
    %137 = vdwg.mxu0
    %v138 = vmax.f32 %v132, 0.0
    %v139 = vmax.f32 %v135, 0.0
    %140 = vst [vmem:[#allocation2 + $0x8] sm:$0xff] %v138
    %141 = vst [vmem:[#allocation2 + $0x10] sm:$0xff] %v139
    %v142 = vld [vmem:[%s4] sm:$0x1]
    %v143 = vld [vmem:[#allocation2 + $0x7] sm:$0xff]
    %v144 = vld [vmem:[#allocation2 + $0xf] sm:$0xff]
    %v145 = vpack.c.bf16 %v144, %v143
    %v146 = vld [vmem:[#allocation8] sm:$0xf]
    %v147 = vld [vmem:[#allocation8 + $0x4] sm:$0xf]
    %v148 = vld [vmem:[#allocation8 + $0x8] sm:$0xf]
    %v149 = vld [vmem:[#allocation8 + $0xc] sm:$0xf]
    %v150 = vld [vmem:[#allocation8 + $0x10] sm:$0xf]
    %v151 = vld [vmem:[#allocation8 + $0x14] sm:$0xf]
    %v152 = vld [vmem:[#allocation8 + $0x18] sm:$0xf]
    %v153 = vld [vmem:[#allocation8 + $0x1c] sm:$0xf]
    %v154 = vld [vmem:[#allocation8 + $0x20] sm:$0xf]
    %v155 = vld [vmem:[#allocation8 + $0x24] sm:$0xf]
    %v156 = vld [vmem:[#allocation8 + $0x28] sm:$0xf]
    %v157 = vld [vmem:[#allocation8 + $0x2c] sm:$0xf]
    %v158 = vld [vmem:[#allocation8 + $0x30] sm:$0xf]
    %v159 = vld [vmem:[#allocation8 + $0x34] sm:$0xf]
    %v160 = vld [vmem:[#allocation8 + $0x38] sm:$0xf]
    %v161 = vld [vmem:[#allocation8 + $0x3c] sm:$0xf]
    %v178 = vunpack.c.l.b16 %v146
    %v179 = vunpack.c.l.b16 %v147
    %v180 = vunpack.c.l.b16 %v148
    %v181 = vunpack.c.l.b16 %v149
    %v182 = vunpack.c.l.b16 %v150
    %v183 = vunpack.c.l.b16 %v151
    %v184 = vunpack.c.l.b16 %v152
    %v185 = vunpack.c.l.b16 %v153
    %v186 = vunpack.c.l.b16 %v154
    %v187 = vunpack.c.l.b16 %v155
    %v188 = vunpack.c.l.b16 %v156
    %v189 = vunpack.c.l.b16 %v157
    %v190 = vunpack.c.l.b16 %v158
    %v191 = vunpack.c.l.b16 %v159
    %v192 = vunpack.c.l.b16 %v160
    %v193 = vunpack.c.l.b16 %v161
    %v194 = vpack.c.b16 %v179, %v178
    %v195 = vpack.c.b16 %v181, %v180
    %v196 = vpack.c.b16 %v183, %v182
    %v197 = vpack.c.b16 %v185, %v184
    %v198 = vpack.c.b16 %v187, %v186
    %v199 = vpack.c.b16 %v189, %v188
    %v200 = vpack.c.b16 %v191, %v190
    %v201 = vpack.c.b16 %v193, %v192
    %210 = vmatprep.subr.bf16.mxu0 0
    %211 = vmatpush1.bf16.msra.mxu0 %v201
    %212 = vmatprep.subr.bf16.mxu0 0
    %213 = vmatpush1.bf16.msra.mxu0 %v200
    %214 = vmatprep.subr.bf16.mxu0 0
    %215 = vmatpush1.bf16.msra.mxu0 %v199
    %216 = vmatprep.subr.bf16.mxu0 0
    %217 = vmatpush1.bf16.msra.mxu0 %v198
    %218 = vmatprep.subr.bf16.mxu0 0
    %219 = vmatpush1.bf16.msra.mxu0 %v197
    %220 = vmatprep.subr.bf16.mxu0 0
    %221 = vmatpush1.bf16.msra.mxu0 %v196
    %222 = vmatprep.subr.bf16.mxu0 0
    %223 = vmatpush1.bf16.msra.mxu0 %v195
    %224 = vmatprep.subr.bf16.mxu0 0
    %225 = vmatpush1.bf16.msra.mxu0 %v194
    %226 = vmatprep.subr.bf16.mxu0 0
    %227 = vmatpush2.bf16.msra.mxu0 0
    %228 = vmatprep.subr.bf16.mxu0 0
    %229 = vmatpush2.bf16.msra.mxu0 0
    %230 = vmatprep.subr.bf16.mxu0 0
    %231 = vmatpush2.bf16.msra.mxu0 0
    %232 = vmatprep.subr.bf16.mxu0 0
    %233 = vmatpush2.bf16.msra.mxu0 0
    %234 = vmatprep.subr.bf16.mxu0 0
    %235 = vmatpush2.bf16.msra.mxu0 0
    %236 = vmatprep.subr.bf16.mxu0 0
    %237 = vmatpush2.bf16.msra.mxu0 0
    %238 = vmatprep.subr.bf16.mxu0 0
    %239 = vmatpush2.bf16.msra.mxu0 0
    %240 = vmatprep.subr.bf16.mxu0 0
    %241 = vmatpush2.bf16.msra.mxu0 0
    %242 = vmatprep.mubr.bf16.mxu0 0
    %243 = vmatmul.mubr.bf16.gmra.mxu0 %v145
    %v244 = vpop.f32.mrf.mxu0
    %v245 = vadd.f32 0.0, %v244
    %v246 = vpop.f32.mrf.mxu0
    %v247 = vpop.f32.mrf.mxu0
    %v248 = vadd.f32 0.0, %v247
    %v249 = vpop.f32.mrf.mxu0
    %250 = vdwg.mxu0
    %v252 = vlaneseq
    %v253 = vshrl.u32 %v252, 7
    %v254 = vsub.s32 0, %v253
    %v255 = vrot.slane %v142, %v254
    %v257 = vadd.f32 %v255, %v245
    %v258 = vadd.f32 %v255, %v248
    %v259 = vld [vmem:[#allocation2 + $0x8] sm:$0xff]
    %v260 = vld [vmem:[#allocation2 + $0x10] sm:$0xff]
    %v261 = vpack.c.bf16 %v260, %v259
    %s262 = scalar_lea.vmem [#allocation8], 64
    %v263 = vld [vmem:[%s262] sm:$0xf]
    %v264 = vld [vmem:[%s262 + $0x4] sm:$0xf]
    %v265 = vld [vmem:[%s262 + $0x8] sm:$0xf]
    %v266 = vld [vmem:[%s262 + $0xc] sm:$0xf]
    %v267 = vld [vmem:[%s262 + $0x10] sm:$0xf]
    %v268 = vld [vmem:[%s262 + $0x14] sm:$0xf]
    %v269 = vld [vmem:[%s262 + $0x18] sm:$0xf]
    %v270 = vld [vmem:[%s262 + $0x1c] sm:$0xf]
    %v271 = vld [vmem:[%s262 + $0x20] sm:$0xf]
    %v272 = vld [vmem:[%s262 + $0x24] sm:$0xf]
    %v273 = vld [vmem:[%s262 + $0x28] sm:$0xf]
    %v274 = vld [vmem:[%s262 + $0x2c] sm:$0xf]
    %v275 = vld [vmem:[%s262 + $0x30] sm:$0xf]
    %v276 = vld [vmem:[%s262 + $0x34] sm:$0xf]
    %v277 = vld [vmem:[%s262 + $0x38] sm:$0xf]
    %v278 = vld [vmem:[%s262 + $0x3c] sm:$0xf]
    %v295 = vunpack.c.l.b16 %v263
    %v296 = vunpack.c.l.b16 %v264
    %v297 = vunpack.c.l.b16 %v265
    %v298 = vunpack.c.l.b16 %v266
    %v299 = vunpack.c.l.b16 %v267
    %v300 = vunpack.c.l.b16 %v268
    %v301 = vunpack.c.l.b16 %v269
    %v302 = vunpack.c.l.b16 %v270
    %v303 = vunpack.c.l.b16 %v271
    %v304 = vunpack.c.l.b16 %v272
    %v305 = vunpack.c.l.b16 %v273
    %v306 = vunpack.c.l.b16 %v274
    %v307 = vunpack.c.l.b16 %v275
    %v308 = vunpack.c.l.b16 %v276
    %v309 = vunpack.c.l.b16 %v277
    %v310 = vunpack.c.l.b16 %v278
    %v311 = vpack.c.b16 %v296, %v295
    %v312 = vpack.c.b16 %v298, %v297
    %v313 = vpack.c.b16 %v300, %v299
    %v314 = vpack.c.b16 %v302, %v301
    %v315 = vpack.c.b16 %v304, %v303
    %v316 = vpack.c.b16 %v306, %v305
    %v317 = vpack.c.b16 %v308, %v307
    %v318 = vpack.c.b16 %v310, %v309
    %327 = vmatprep.subr.bf16.mxu0 0
    %328 = vmatpush1.bf16.msra.mxu0 %v318
    %329 = vmatprep.subr.bf16.mxu0 0
    %330 = vmatpush1.bf16.msra.mxu0 %v317
    %331 = vmatprep.subr.bf16.mxu0 0
    %332 = vmatpush1.bf16.msra.mxu0 %v316
    %333 = vmatprep.subr.bf16.mxu0 0
    %334 = vmatpush1.bf16.msra.mxu0 %v315
    %335 = vmatprep.subr.bf16.mxu0 0
    %336 = vmatpush1.bf16.msra.mxu0 %v314
    %337 = vmatprep.subr.bf16.mxu0 0
    %338 = vmatpush1.bf16.msra.mxu0 %v313
    %339 = vmatprep.subr.bf16.mxu0 0
    %340 = vmatpush1.bf16.msra.mxu0 %v312
    %341 = vmatprep.subr.bf16.mxu0 0
    %342 = vmatpush1.bf16.msra.mxu0 %v311
    %343 = vmatprep.subr.bf16.mxu0 0
    %344 = vmatpush2.bf16.msra.mxu0 0
    %345 = vmatprep.subr.bf16.mxu0 0
    %346 = vmatpush2.bf16.msra.mxu0 0
    %347 = vmatprep.subr.bf16.mxu0 0
    %348 = vmatpush2.bf16.msra.mxu0 0
    %349 = vmatprep.subr.bf16.mxu0 0
    %350 = vmatpush2.bf16.msra.mxu0 0
    %351 = vmatprep.subr.bf16.mxu0 0
    %352 = vmatpush2.bf16.msra.mxu0 0
    %353 = vmatprep.subr.bf16.mxu0 0
    %354 = vmatpush2.bf16.msra.mxu0 0
    %355 = vmatprep.subr.bf16.mxu0 0
    %356 = vmatpush2.bf16.msra.mxu0 0
    %357 = vmatprep.subr.bf16.mxu0 0
    %358 = vmatpush2.bf16.msra.mxu0 0
    %359 = vmatprep.mubr.bf16.mxu0 0
    %360 = vmatmul.mubr.bf16.gmra.mxu0 %v261
    %v361 = vpop.f32.mrf.mxu0
    %v362 = vadd.f32 0.0, %v361
    %v363 = vpop.f32.mrf.mxu0
    %v364 = vpop.f32.mrf.mxu0
    %v365 = vadd.f32 0.0, %v364
    %v366 = vpop.f32.mrf.mxu0
    %367 = vdwg.mxu0
    %v368 = vadd.f32 %v257, %v362
    %v369 = vadd.f32 %v258, %v365
    %v370 = vld [vmem:[#allocation2 + $0x9] sm:$0xff]
    %v371 = vld [vmem:[#allocation2 + $0x11] sm:$0xff]
    %v372 = vpack.c.bf16 %v371, %v370
    %s373 = scalar_lea.vmem [#allocation8], 128
    %v374 = vld [vmem:[%s373] sm:$0xf]
    %v375 = vld [vmem:[%s373 + $0x4] sm:$0xf]
    %v376 = vld [vmem:[%s373 + $0x8] sm:$0xf]
    %v377 = vld [vmem:[%s373 + $0xc] sm:$0xf]
    %v378 = vld [vmem:[%s373 + $0x10] sm:$0xf]
    %v379 = vld [vmem:[%s373 + $0x14] sm:$0xf]
    %v380 = vld [vmem:[%s373 + $0x18] sm:$0xf]
    %v381 = vld [vmem:[%s373 + $0x1c] sm:$0xf]
    %v382 = vld [vmem:[%s373 + $0x20] sm:$0xf]
    %v383 = vld [vmem:[%s373 + $0x24] sm:$0xf]
    %v384 = vld [vmem:[%s373 + $0x28] sm:$0xf]
    %v385 = vld [vmem:[%s373 + $0x2c] sm:$0xf]
    %v386 = vld [vmem:[%s373 + $0x30] sm:$0xf]
    %v387 = vld [vmem:[%s373 + $0x34] sm:$0xf]
    %v388 = vld [vmem:[%s373 + $0x38] sm:$0xf]
    %v389 = vld [vmem:[%s373 + $0x3c] sm:$0xf]
    %v406 = vunpack.c.l.b16 %v374
    %v407 = vunpack.c.l.b16 %v375
    %v408 = vunpack.c.l.b16 %v376
    %v409 = vunpack.c.l.b16 %v377
    %v410 = vunpack.c.l.b16 %v378
    %v411 = vunpack.c.l.b16 %v379
    %v412 = vunpack.c.l.b16 %v380
    %v413 = vunpack.c.l.b16 %v381
    %v414 = vunpack.c.l.b16 %v382
    %v415 = vunpack.c.l.b16 %v383
    %v416 = vunpack.c.l.b16 %v384
    %v417 = vunpack.c.l.b16 %v385
    %v418 = vunpack.c.l.b16 %v386
    %v419 = vunpack.c.l.b16 %v387
    %v420 = vunpack.c.l.b16 %v388
    %v421 = vunpack.c.l.b16 %v389
    %v422 = vpack.c.b16 %v407, %v406
    %v423 = vpack.c.b16 %v409, %v408
    %v424 = vpack.c.b16 %v411, %v410
    %v425 = vpack.c.b16 %v413, %v412
    %v426 = vpack.c.b16 %v415, %v414
    %v427 = vpack.c.b16 %v417, %v416
    %v428 = vpack.c.b16 %v419, %v418
    %v429 = vpack.c.b16 %v421, %v420
    %438 = vmatprep.subr.bf16.mxu0 0
    %439 = vmatpush1.bf16.msra.mxu0 %v429
    %440 = vmatprep.subr.bf16.mxu0 0
    %441 = vmatpush1.bf16.msra.mxu0 %v428
    %442 = vmatprep.subr.bf16.mxu0 0
    %443 = vmatpush1.bf16.msra.mxu0 %v427
    %444 = vmatprep.subr.bf16.mxu0 0
    %445 = vmatpush1.bf16.msra.mxu0 %v426
    %446 = vmatprep.subr.bf16.mxu0 0
    %447 = vmatpush1.bf16.msra.mxu0 %v425
    %448 = vmatprep.subr.bf16.mxu0 0
    %449 = vmatpush1.bf16.msra.mxu0 %v424
    %450 = vmatprep.subr.bf16.mxu0 0
    %451 = vmatpush1.bf16.msra.mxu0 %v423
    %452 = vmatprep.subr.bf16.mxu0 0
    %453 = vmatpush1.bf16.msra.mxu0 %v422
    %454 = vmatprep.subr.bf16.mxu0 0
    %455 = vmatpush2.bf16.msra.mxu0 0
    %456 = vmatprep.subr.bf16.mxu0 0
    %457 = vmatpush2.bf16.msra.mxu0 0
    %458 = vmatprep.subr.bf16.mxu0 0
    %459 = vmatpush2.bf16.msra.mxu0 0
    %460 = vmatprep.subr.bf16.mxu0 0
    %461 = vmatpush2.bf16.msra.mxu0 0
    %462 = vmatprep.subr.bf16.mxu0 0
    %463 = vmatpush2.bf16.msra.mxu0 0
    %464 = vmatprep.subr.bf16.mxu0 0
    %465 = vmatpush2.bf16.msra.mxu0 0
    %466 = vmatprep.subr.bf16.mxu0 0
    %467 = vmatpush2.bf16.msra.mxu0 0
    %468 = vmatprep.subr.bf16.mxu0 0
    %469 = vmatpush2.bf16.msra.mxu0 0
    %470 = vmatprep.mubr.bf16.mxu0 0
    %471 = vmatmul.mubr.bf16.gmra.mxu0 %v372
    %v472 = vpop.f32.mrf.mxu0
    %v473 = vadd.f32 0.0, %v472
    %v474 = vpop.f32.mrf.mxu0
    %v475 = vpop.f32.mrf.mxu0
    %v476 = vadd.f32 0.0, %v475
    %v477 = vpop.f32.mrf.mxu0
    %478 = vdwg.mxu0
    %v479 = vadd.f32 %v368, %v473
    %v480 = vadd.f32 %v369, %v476
    %v481 = vmax.f32 %v479, 0.0
    %v482 = vmax.f32 %v480, 0.0
    %v483 = vadd.f32 %v138, %v481
    %v484 = vadd.f32 %v139, %v482
    %485 = vst [vmem:[#allocation2 + $0x8] sm:$0xff] %v483
    %486 = vst [vmem:[#allocation2 + $0x10] sm:$0xff] %v484
    %s487 = scalar_lea.vmem %s4, 1
    %v488 = vld [vmem:[%s487] sm:$0x1]
    %v489 = vld [vmem:[#allocation2 + $0x7] sm:$0xff]
    %v490 = vld [vmem:[#allocation2 + $0xf] sm:$0xff]
    %v491 = vpack.c.bf16 %v490, %v489
    %s492 = scalar_lea.vmem [#allocation8], 192
    %v493 = vld [vmem:[%s492] sm:$0xf]
    %v494 = vld [vmem:[%s492 + $0x4] sm:$0xf]
    %v495 = vld [vmem:[%s492 + $0x8] sm:$0xf]
    %v496 = vld [vmem:[%s492 + $0xc] sm:$0xf]
    %v497 = vld [vmem:[%s492 + $0x10] sm:$0xf]
    %v498 = vld [vmem:[%s492 + $0x14] sm:$0xf]
    %v499 = vld [vmem:[%s492 + $0x18] sm:$0xf]
    %v500 = vld [vmem:[%s492 + $0x1c] sm:$0xf]
    %v501 = vld [vmem:[%s492 + $0x20] sm:$0xf]
    %v502 = vld [vmem:[%s492 + $0x24] sm:$0xf]
    %v503 = vld [vmem:[%s492 + $0x28] sm:$0xf]
    %v504 = vld [vmem:[%s492 + $0x2c] sm:$0xf]
    %v505 = vld [vmem:[%s492 + $0x30] sm:$0xf]
    %v506 = vld [vmem:[%s492 + $0x34] sm:$0xf]
    %v507 = vld [vmem:[%s492 + $0x38] sm:$0xf]
    %v508 = vld [vmem:[%s492 + $0x3c] sm:$0xf]
    %v525 = vunpack.c.l.b16 %v493
    %v526 = vunpack.c.l.b16 %v494
    %v527 = vunpack.c.l.b16 %v495
    %v528 = vunpack.c.l.b16 %v496
    %v529 = vunpack.c.l.b16 %v497
    %v530 = vunpack.c.l.b16 %v498
    %v531 = vunpack.c.l.b16 %v499
    %v532 = vunpack.c.l.b16 %v500
    %v533 = vunpack.c.l.b16 %v501
    %v534 = vunpack.c.l.b16 %v502
    %v535 = vunpack.c.l.b16 %v503
    %v536 = vunpack.c.l.b16 %v504
    %v537 = vunpack.c.l.b16 %v505
    %v538 = vunpack.c.l.b16 %v506
    %v539 = vunpack.c.l.b16 %v507
    %v540 = vunpack.c.l.b16 %v508
    %v541 = vpack.c.b16 %v526, %v525
    %v542 = vpack.c.b16 %v528, %v527
    %v543 = vpack.c.b16 %v530, %v529
    %v544 = vpack.c.b16 %v532, %v531
    %v545 = vpack.c.b16 %v534, %v533
    %v546 = vpack.c.b16 %v536, %v535
    %v547 = vpack.c.b16 %v538, %v537
    %v548 = vpack.c.b16 %v540, %v539
    %557 = vmatprep.subr.bf16.mxu0 0
    %558 = vmatpush1.bf16.msra.mxu0 %v548
    %559 = vmatprep.subr.bf16.mxu0 0
    %560 = vmatpush1.bf16.msra.mxu0 %v547
    %561 = vmatprep.subr.bf16.mxu0 0
    %562 = vmatpush1.bf16.msra.mxu0 %v546
    %563 = vmatprep.subr.bf16.mxu0 0
    %564 = vmatpush1.bf16.msra.mxu0 %v545
    %565 = vmatprep.subr.bf16.mxu0 0
    %566 = vmatpush1.bf16.msra.mxu0 %v544
    %567 = vmatprep.subr.bf16.mxu0 0
    %568 = vmatpush1.bf16.msra.mxu0 %v543
    %569 = vmatprep.subr.bf16.mxu0 0
    %570 = vmatpush1.bf16.msra.mxu0 %v542
    %571 = vmatprep.subr.bf16.mxu0 0
    %572 = vmatpush1.bf16.msra.mxu0 %v541
    %573 = vmatprep.subr.bf16.mxu0 0
    %574 = vmatpush2.bf16.msra.mxu0 0
    %575 = vmatprep.subr.bf16.mxu0 0
    %576 = vmatpush2.bf16.msra.mxu0 0
    %577 = vmatprep.subr.bf16.mxu0 0
    %578 = vmatpush2.bf16.msra.mxu0 0
    %579 = vmatprep.subr.bf16.mxu0 0
    %580 = vmatpush2.bf16.msra.mxu0 0
    %581 = vmatprep.subr.bf16.mxu0 0
    %582 = vmatpush2.bf16.msra.mxu0 0
    %583 = vmatprep.subr.bf16.mxu0 0
    %584 = vmatpush2.bf16.msra.mxu0 0
    %585 = vmatprep.subr.bf16.mxu0 0
    %586 = vmatpush2.bf16.msra.mxu0 0
    %587 = vmatprep.subr.bf16.mxu0 0
    %588 = vmatpush2.bf16.msra.mxu0 0
    %589 = vmatprep.mubr.bf16.mxu0 0
    %590 = vmatmul.mubr.bf16.gmra.mxu0 %v491
    %v591 = vpop.f32.mrf.mxu0
    %v592 = vadd.f32 0.0, %v591
    %v593 = vpop.f32.mrf.mxu0
    %v594 = vpop.f32.mrf.mxu0
    %v595 = vadd.f32 0.0, %v594
    %v596 = vpop.f32.mrf.mxu0
    %597 = vdwg.mxu0
    %v599 = vlaneseq
    %v600 = vshrl.u32 %v599, 7
    %v601 = vsub.s32 0, %v600
    %v602 = vrot.slane %v488, %v601
    %v604 = vadd.f32 %v602, %v592
    %v605 = vadd.f32 %v602, %v595
    %v606 = vld [vmem:[#allocation2 + $0x8] sm:$0xff]
    %v607 = vld [vmem:[#allocation2 + $0x10] sm:$0xff]
    %v608 = vpack.c.bf16 %v607, %v606
    %s609 = scalar_lea.vmem [#allocation8], 256
    %v610 = vld [vmem:[%s609] sm:$0xf]
    %v611 = vld [vmem:[%s609 + $0x4] sm:$0xf]
    %v612 = vld [vmem:[%s609 + $0x8] sm:$0xf]
    %v613 = vld [vmem:[%s609 + $0xc] sm:$0xf]
    %v614 = vld [vmem:[%s609 + $0x10] sm:$0xf]
    %v615 = vld [vmem:[%s609 + $0x14] sm:$0xf]
    %v616 = vld [vmem:[%s609 + $0x18] sm:$0xf]
    %v617 = vld [vmem:[%s609 + $0x1c] sm:$0xf]
    %v618 = vld [vmem:[%s609 + $0x20] sm:$0xf]
    %v619 = vld [vmem:[%s609 + $0x24] sm:$0xf]
    %v620 = vld [vmem:[%s609 + $0x28] sm:$0xf]
    %v621 = vld [vmem:[%s609 + $0x2c] sm:$0xf]
    %v622 = vld [vmem:[%s609 + $0x30] sm:$0xf]
    %v623 = vld [vmem:[%s609 + $0x34] sm:$0xf]
    %v624 = vld [vmem:[%s609 + $0x38] sm:$0xf]
    %v625 = vld [vmem:[%s609 + $0x3c] sm:$0xf]
    %v642 = vunpack.c.l.b16 %v610
    %v643 = vunpack.c.l.b16 %v611
    %v644 = vunpack.c.l.b16 %v612
    %v645 = vunpack.c.l.b16 %v613
    %v646 = vunpack.c.l.b16 %v614
    %v647 = vunpack.c.l.b16 %v615
    %v648 = vunpack.c.l.b16 %v616
    %v649 = vunpack.c.l.b16 %v617
    %v650 = vunpack.c.l.b16 %v618
    %v651 = vunpack.c.l.b16 %v619
    %v652 = vunpack.c.l.b16 %v620
    %v653 = vunpack.c.l.b16 %v621
    %v654 = vunpack.c.l.b16 %v622
    %v655 = vunpack.c.l.b16 %v623
    %v656 = vunpack.c.l.b16 %v624
    %v657 = vunpack.c.l.b16 %v625
    %v658 = vpack.c.b16 %v643, %v642
    %v659 = vpack.c.b16 %v645, %v644
    %v660 = vpack.c.b16 %v647, %v646
    %v661 = vpack.c.b16 %v649, %v648
    %v662 = vpack.c.b16 %v651, %v650
    %v663 = vpack.c.b16 %v653, %v652
    %v664 = vpack.c.b16 %v655, %v654
    %v665 = vpack.c.b16 %v657, %v656
    %674 = vmatprep.subr.bf16.mxu0 0
    %675 = vmatpush1.bf16.msra.mxu0 %v665
    %676 = vmatprep.subr.bf16.mxu0 0
    %677 = vmatpush1.bf16.msra.mxu0 %v664
    %678 = vmatprep.subr.bf16.mxu0 0
    %679 = vmatpush1.bf16.msra.mxu0 %v663
    %680 = vmatprep.subr.bf16.mxu0 0
    %681 = vmatpush1.bf16.msra.mxu0 %v662
    %682 = vmatprep.subr.bf16.mxu0 0
    %683 = vmatpush1.bf16.msra.mxu0 %v661
    %684 = vmatprep.subr.bf16.mxu0 0
    %685 = vmatpush1.bf16.msra.mxu0 %v660
    %686 = vmatprep.subr.bf16.mxu0 0
    %687 = vmatpush1.bf16.msra.mxu0 %v659
    %688 = vmatprep.subr.bf16.mxu0 0
    %689 = vmatpush1.bf16.msra.mxu0 %v658
    %690 = vmatprep.subr.bf16.mxu0 0
    %691 = vmatpush2.bf16.msra.mxu0 0
    %692 = vmatprep.subr.bf16.mxu0 0
    %693 = vmatpush2.bf16.msra.mxu0 0
    %694 = vmatprep.subr.bf16.mxu0 0
    %695 = vmatpush2.bf16.msra.mxu0 0
    %696 = vmatprep.subr.bf16.mxu0 0
    %697 = vmatpush2.bf16.msra.mxu0 0
    %698 = vmatprep.subr.bf16.mxu0 0
    %699 = vmatpush2.bf16.msra.mxu0 0
    %700 = vmatprep.subr.bf16.mxu0 0
    %701 = vmatpush2.bf16.msra.mxu0 0
    %702 = vmatprep.subr.bf16.mxu0 0
    %703 = vmatpush2.bf16.msra.mxu0 0
    %704 = vmatprep.subr.bf16.mxu0 0
    %705 = vmatpush2.bf16.msra.mxu0 0
    %706 = vmatprep.mubr.bf16.mxu0 0
    %707 = vmatmul.mubr.bf16.gmra.mxu0 %v608
    %v708 = vpop.f32.mrf.mxu0
    %v709 = vadd.f32 0.0, %v708
    %v710 = vpop.f32.mrf.mxu0
    %v711 = vpop.f32.mrf.mxu0
    %v712 = vadd.f32 0.0, %v711
    %v713 = vpop.f32.mrf.mxu0
    %714 = vdwg.mxu0
    %v715 = vadd.f32 %v604, %v709
    %v716 = vadd.f32 %v605, %v712
    %v717 = vld [vmem:[#allocation2 + $0x9] sm:$0xff]
    %v718 = vld [vmem:[#allocation2 + $0x11] sm:$0xff]
    %v719 = vpack.c.bf16 %v718, %v717
    %s720 = scalar_lea.vmem [#allocation8], 320
    %v721 = vld [vmem:[%s720] sm:$0xf]
    %v722 = vld [vmem:[%s720 + $0x4] sm:$0xf]
    %v723 = vld [vmem:[%s720 + $0x8] sm:$0xf]
    %v724 = vld [vmem:[%s720 + $0xc] sm:$0xf]
    %v725 = vld [vmem:[%s720 + $0x10] sm:$0xf]
    %v726 = vld [vmem:[%s720 + $0x14] sm:$0xf]
    %v727 = vld [vmem:[%s720 + $0x18] sm:$0xf]
    %v728 = vld [vmem:[%s720 + $0x1c] sm:$0xf]
    %v729 = vld [vmem:[%s720 + $0x20] sm:$0xf]
    %v730 = vld [vmem:[%s720 + $0x24] sm:$0xf]
    %v731 = vld [vmem:[%s720 + $0x28] sm:$0xf]
    %v732 = vld [vmem:[%s720 + $0x2c] sm:$0xf]
    %v733 = vld [vmem:[%s720 + $0x30] sm:$0xf]
    %v734 = vld [vmem:[%s720 + $0x34] sm:$0xf]
    %v735 = vld [vmem:[%s720 + $0x38] sm:$0xf]
    %v736 = vld [vmem:[%s720 + $0x3c] sm:$0xf]
    %v753 = vunpack.c.l.b16 %v721
    %v754 = vunpack.c.l.b16 %v722
    %v755 = vunpack.c.l.b16 %v723
    %v756 = vunpack.c.l.b16 %v724
    %v757 = vunpack.c.l.b16 %v725
    %v758 = vunpack.c.l.b16 %v726
    %v759 = vunpack.c.l.b16 %v727
    %v760 = vunpack.c.l.b16 %v728
    %v761 = vunpack.c.l.b16 %v729
    %v762 = vunpack.c.l.b16 %v730
    %v763 = vunpack.c.l.b16 %v731
    %v764 = vunpack.c.l.b16 %v732
    %v765 = vunpack.c.l.b16 %v733
    %v766 = vunpack.c.l.b16 %v734
    %v767 = vunpack.c.l.b16 %v735
    %v768 = vunpack.c.l.b16 %v736
    %v769 = vpack.c.b16 %v754, %v753
    %v770 = vpack.c.b16 %v756, %v755
    %v771 = vpack.c.b16 %v758, %v757
    %v772 = vpack.c.b16 %v760, %v759
    %v773 = vpack.c.b16 %v762, %v761
    %v774 = vpack.c.b16 %v764, %v763
    %v775 = vpack.c.b16 %v766, %v765
    %v776 = vpack.c.b16 %v768, %v767
    %785 = vmatprep.subr.bf16.mxu0 0
    %786 = vmatpush1.bf16.msra.mxu0 %v776
    %787 = vmatprep.subr.bf16.mxu0 0
    %788 = vmatpush1.bf16.msra.mxu0 %v775
    %789 = vmatprep.subr.bf16.mxu0 0
    %790 = vmatpush1.bf16.msra.mxu0 %v774
    %791 = vmatprep.subr.bf16.mxu0 0
    %792 = vmatpush1.bf16.msra.mxu0 %v773
    %793 = vmatprep.subr.bf16.mxu0 0
    %794 = vmatpush1.bf16.msra.mxu0 %v772
    %795 = vmatprep.subr.bf16.mxu0 0
    %796 = vmatpush1.bf16.msra.mxu0 %v771
    %797 = vmatprep.subr.bf16.mxu0 0
    %798 = vmatpush1.bf16.msra.mxu0 %v770
    %799 = vmatprep.subr.bf16.mxu0 0
    %800 = vmatpush1.bf16.msra.mxu0 %v769
    %801 = vmatprep.subr.bf16.mxu0 0
    %802 = vmatpush2.bf16.msra.mxu0 0
    %803 = vmatprep.subr.bf16.mxu0 0
    %804 = vmatpush2.bf16.msra.mxu0 0
    %805 = vmatprep.subr.bf16.mxu0 0
    %806 = vmatpush2.bf16.msra.mxu0 0
    %807 = vmatprep.subr.bf16.mxu0 0
    %808 = vmatpush2.bf16.msra.mxu0 0
    %809 = vmatprep.subr.bf16.mxu0 0
    %810 = vmatpush2.bf16.msra.mxu0 0
    %811 = vmatprep.subr.bf16.mxu0 0
    %812 = vmatpush2.bf16.msra.mxu0 0
    %813 = vmatprep.subr.bf16.mxu0 0
    %814 = vmatpush2.bf16.msra.mxu0 0
    %815 = vmatprep.subr.bf16.mxu0 0
    %816 = vmatpush2.bf16.msra.mxu0 0
    %817 = vmatprep.mubr.bf16.mxu0 0
    %818 = vmatmul.mubr.bf16.gmra.mxu0 %v719
    %v819 = vpop.f32.mrf.mxu0
    %v820 = vadd.f32 0.0, %v819
    %v821 = vpop.f32.mrf.mxu0
    %v822 = vpop.f32.mrf.mxu0
    %v823 = vadd.f32 0.0, %v822
    %v824 = vpop.f32.mrf.mxu0
    %825 = vdwg.mxu0
    %v826 = vadd.f32 %v715, %v820
    %v827 = vadd.f32 %v716, %v823
    %v828 = vmax.f32 %v826, 0.0
    %v829 = vmax.f32 %v827, 0.0
    %v830 = vadd.f32 %v483, %v828
    %v831 = vadd.f32 %v484, %v829
    %832 = vst [vmem:[#allocation9] sm:$0xff] %v830
    %833 = vst [vmem:[#allocation9 + $0x8] sm:$0xff] %v831
    %s834 = scalar_lea.vmem [#allocation3], 16
    %v835 = vld [vmem:[%s834] sm:$0xff]
    %v836 = vld [vmem:[%s834 + $0x8] sm:$0xff]
    %v837 = vpack.c.bf16 %v836, %v835
    %v839 = vsel %vm93, %v837, 0
    %841 = vmatprep.subr.bf16.mxu0 0
    %842 = vmatpush1.bf16.msra.mxu0 0
    %843 = vmatprep.subr.bf16.mxu0 0
    %844 = vmatpush1.bf16.msra.mxu0 0
    %845 = vmatprep.subr.bf16.mxu0 0
    %846 = vmatpush1.bf16.msra.mxu0 0
    %847 = vmatprep.subr.bf16.mxu0 0
    %848 = vmatpush1.bf16.msra.mxu0 0
    %849 = vmatprep.subr.bf16.mxu0 0
    %850 = vmatpush1.bf16.msra.mxu0 0
    %851 = vmatprep.subr.bf16.mxu0 0
    %852 = vmatpush1.bf16.msra.mxu0 0
    %853 = vmatprep.subr.bf16.mxu0 0
    %854 = vmatpush1.bf16.msra.mxu0 %v90
    %855 = vmatprep.subr.bf16.mxu0 0
    %856 = vmatpush1.bf16.msra.mxu0 %v89
    %857 = vmatprep.subr.bf16.mxu0 0
    %858 = vmatpush2.bf16.msra.mxu0 0
    %859 = vmatprep.subr.bf16.mxu0 0
    %860 = vmatpush2.bf16.msra.mxu0 0
    %861 = vmatprep.subr.bf16.mxu0 0
    %862 = vmatpush2.bf16.msra.mxu0 0
    %863 = vmatprep.subr.bf16.mxu0 0
    %864 = vmatpush2.bf16.msra.mxu0 0
    %865 = vmatprep.subr.bf16.mxu0 0
    %866 = vmatpush2.bf16.msra.mxu0 0
    %867 = vmatprep.subr.bf16.mxu0 0
    %868 = vmatpush2.bf16.msra.mxu0 0
    %869 = vmatprep.subr.bf16.mxu0 0
    %870 = vmatpush2.bf16.msra.mxu0 0
    %871 = vmatprep.subr.bf16.mxu0 0
    %872 = vmatpush2.bf16.msra.mxu0 0
    %873 = vmatprep.mubr.bf16.mxu0 0
    %874 = vmatmul.mubr.bf16.gmra.mxu0 %v839
    %v875 = vpop.f32.mrf.mxu0
    %v876 = vadd.f32 %v79, %v875
    %v877 = vpop.f32.mrf.mxu0
    %v878 = vpop.f32.mrf.mxu0
    %v879 = vadd.f32 %v79, %v878
    %v880 = vpop.f32.mrf.mxu0
    %881 = vdwg.mxu0
    %v882 = vmax.f32 %v876, 0.0
    %v883 = vmax.f32 %v879, 0.0
    %884 = vst [vmem:[#allocation2 + $0x8] sm:$0xff] %v882
    %885 = vst [vmem:[#allocation2 + $0x10] sm:$0xff] %v883
    %v886 = vld [vmem:[%s4] sm:$0x1]
    %v887 = vld [vmem:[#allocation2 + $0x7] sm:$0xff]
    %v888 = vld [vmem:[#allocation2 + $0xf] sm:$0xff]
    %v889 = vpack.c.bf16 %v888, %v887
    %v890 = vld [vmem:[#allocation8] sm:$0xf]
    %v891 = vld [vmem:[#allocation8 + $0x4] sm:$0xf]
    %v892 = vld [vmem:[#allocation8 + $0x8] sm:$0xf]
    %v893 = vld [vmem:[#allocation8 + $0xc] sm:$0xf]
    %v894 = vld [vmem:[#allocation8 + $0x10] sm:$0xf]
    %v895 = vld [vmem:[#allocation8 + $0x14] sm:$0xf]
    %v896 = vld [vmem:[#allocation8 + $0x18] sm:$0xf]
    %v897 = vld [vmem:[#allocation8 + $0x1c] sm:$0xf]
    %v898 = vld [vmem:[#allocation8 + $0x20] sm:$0xf]
    %v899 = vld [vmem:[#allocation8 + $0x24] sm:$0xf]
    %v900 = vld [vmem:[#allocation8 + $0x28] sm:$0xf]
    %v901 = vld [vmem:[#allocation8 + $0x2c] sm:$0xf]
    %v902 = vld [vmem:[#allocation8 + $0x30] sm:$0xf]
    %v903 = vld [vmem:[#allocation8 + $0x34] sm:$0xf]
    %v904 = vld [vmem:[#allocation8 + $0x38] sm:$0xf]
    %v905 = vld [vmem:[#allocation8 + $0x3c] sm:$0xf]
    %v922 = vunpack.c.l.b16 %v890
    %v923 = vunpack.c.l.b16 %v891
    %v924 = vunpack.c.l.b16 %v892
    %v925 = vunpack.c.l.b16 %v893
    %v926 = vunpack.c.l.b16 %v894
    %v927 = vunpack.c.l.b16 %v895
    %v928 = vunpack.c.l.b16 %v896
    %v929 = vunpack.c.l.b16 %v897
    %v930 = vunpack.c.l.b16 %v898
    %v931 = vunpack.c.l.b16 %v899
    %v932 = vunpack.c.l.b16 %v900
    %v933 = vunpack.c.l.b16 %v901
    %v934 = vunpack.c.l.b16 %v902
    %v935 = vunpack.c.l.b16 %v903
    %v936 = vunpack.c.l.b16 %v904
    %v937 = vunpack.c.l.b16 %v905
    %v938 = vpack.c.b16 %v923, %v922
    %v939 = vpack.c.b16 %v925, %v924
    %v940 = vpack.c.b16 %v927, %v926
    %v941 = vpack.c.b16 %v929, %v928
    %v942 = vpack.c.b16 %v931, %v930
    %v943 = vpack.c.b16 %v933, %v932
    %v944 = vpack.c.b16 %v935, %v934
    %v945 = vpack.c.b16 %v937, %v936
    %954 = vmatprep.subr.bf16.mxu0 0
    %955 = vmatpush1.bf16.msra.mxu0 %v945
    %956 = vmatprep.subr.bf16.mxu0 0
    %957 = vmatpush1.bf16.msra.mxu0 %v944
    %958 = vmatprep.subr.bf16.mxu0 0
    %959 = vmatpush1.bf16.msra.mxu0 %v943
    %960 = vmatprep.subr.bf16.mxu0 0
    %961 = vmatpush1.bf16.msra.mxu0 %v942
    %962 = vmatprep.subr.bf16.mxu0 0
    %963 = vmatpush1.bf16.msra.mxu0 %v941
    %964 = vmatprep.subr.bf16.mxu0 0
    %965 = vmatpush1.bf16.msra.mxu0 %v940
    %966 = vmatprep.subr.bf16.mxu0 0
    %967 = vmatpush1.bf16.msra.mxu0 %v939
    %968 = vmatprep.subr.bf16.mxu0 0
    %969 = vmatpush1.bf16.msra.mxu0 %v938
    %970 = vmatprep.subr.bf16.mxu0 0
    %971 = vmatpush2.bf16.msra.mxu0 0
    %972 = vmatprep.subr.bf16.mxu0 0
    %973 = vmatpush2.bf16.msra.mxu0 0
    %974 = vmatprep.subr.bf16.mxu0 0
    %975 = vmatpush2.bf16.msra.mxu0 0
    %976 = vmatprep.subr.bf16.mxu0 0
    %977 = vmatpush2.bf16.msra.mxu0 0
    %978 = vmatprep.subr.bf16.mxu0 0
    %979 = vmatpush2.bf16.msra.mxu0 0
    %980 = vmatprep.subr.bf16.mxu0 0
    %981 = vmatpush2.bf16.msra.mxu0 0
    %982 = vmatprep.subr.bf16.mxu0 0
    %983 = vmatpush2.bf16.msra.mxu0 0
    %984 = vmatprep.subr.bf16.mxu0 0
    %985 = vmatpush2.bf16.msra.mxu0 0
    %986 = vmatprep.mubr.bf16.mxu0 0
    %987 = vmatmul.mubr.bf16.gmra.mxu0 %v889
    %v988 = vpop.f32.mrf.mxu0
    %v989 = vadd.f32 0.0, %v988
    %v990 = vpop.f32.mrf.mxu0
    %v991 = vpop.f32.mrf.mxu0
    %v992 = vadd.f32 0.0, %v991
    %v993 = vpop.f32.mrf.mxu0
    %994 = vdwg.mxu0
    %v996 = vlaneseq
    %v997 = vshrl.u32 %v996, 7
    %v998 = vsub.s32 0, %v997
    %v999 = vrot.slane %v886, %v998
    %v1001 = vadd.f32 %v999, %v989
    %v1002 = vadd.f32 %v999, %v992
    %v1003 = vld [vmem:[#allocation2 + $0x8] sm:$0xff]
    %v1004 = vld [vmem:[#allocation2 + $0x10] sm:$0xff]
    %v1005 = vpack.c.bf16 %v1004, %v1003
    %v1006 = vld [vmem:[%s262] sm:$0xf]
    %v1007 = vld [vmem:[%s262 + $0x4] sm:$0xf]
    %v1008 = vld [vmem:[%s262 + $0x8] sm:$0xf]
    %v1009 = vld [vmem:[%s262 + $0xc] sm:$0xf]
    %v1010 = vld [vmem:[%s262 + $0x10] sm:$0xf]
    %v1011 = vld [vmem:[%s262 + $0x14] sm:$0xf]
    %v1012 = vld [vmem:[%s262 + $0x18] sm:$0xf]
    %v1013 = vld [vmem:[%s262 + $0x1c] sm:$0xf]
    %v1014 = vld [vmem:[%s262 + $0x20] sm:$0xf]
    %v1015 = vld [vmem:[%s262 + $0x24] sm:$0xf]
    %v1016 = vld [vmem:[%s262 + $0x28] sm:$0xf]
    %v1017 = vld [vmem:[%s262 + $0x2c] sm:$0xf]
    %v1018 = vld [vmem:[%s262 + $0x30] sm:$0xf]
    %v1019 = vld [vmem:[%s262 + $0x34] sm:$0xf]
    %v1020 = vld [vmem:[%s262 + $0x38] sm:$0xf]
    %v1021 = vld [vmem:[%s262 + $0x3c] sm:$0xf]
    %v1038 = vunpack.c.l.b16 %v1006
    %v1039 = vunpack.c.l.b16 %v1007
    %v1040 = vunpack.c.l.b16 %v1008
    %v1041 = vunpack.c.l.b16 %v1009
    %v1042 = vunpack.c.l.b16 %v1010
    %v1043 = vunpack.c.l.b16 %v1011
    %v1044 = vunpack.c.l.b16 %v1012
    %v1045 = vunpack.c.l.b16 %v1013
    %v1046 = vunpack.c.l.b16 %v1014
    %v1047 = vunpack.c.l.b16 %v1015
    %v1048 = vunpack.c.l.b16 %v1016
    %v1049 = vunpack.c.l.b16 %v1017
    %v1050 = vunpack.c.l.b16 %v1018
    %v1051 = vunpack.c.l.b16 %v1019
    %v1052 = vunpack.c.l.b16 %v1020
    %v1053 = vunpack.c.l.b16 %v1021
    %v1054 = vpack.c.b16 %v1039, %v1038
    %v1055 = vpack.c.b16 %v1041, %v1040
    %v1056 = vpack.c.b16 %v1043, %v1042
    %v1057 = vpack.c.b16 %v1045, %v1044
    %v1058 = vpack.c.b16 %v1047, %v1046
    %v1059 = vpack.c.b16 %v1049, %v1048
    %v1060 = vpack.c.b16 %v1051, %v1050
    %v1061 = vpack.c.b16 %v1053, %v1052
    %1070 = vmatprep.subr.bf16.mxu0 0
    %1071 = vmatpush1.bf16.msra.mxu0 %v1061
    %1072 = vmatprep.subr.bf16.mxu0 0
    %1073 = vmatpush1.bf16.msra.mxu0 %v1060
    %1074 = vmatprep.subr.bf16.mxu0 0
    %1075 = vmatpush1.bf16.msra.mxu0 %v1059
    %1076 = vmatprep.subr.bf16.mxu0 0
    %1077 = vmatpush1.bf16.msra.mxu0 %v1058
    %1078 = vmatprep.subr.bf16.mxu0 0
    %1079 = vmatpush1.bf16.msra.mxu0 %v1057
    %1080 = vmatprep.subr.bf16.mxu0 0
    %1081 = vmatpush1.bf16.msra.mxu0 %v1056
    %1082 = vmatprep.subr.bf16.mxu0 0
    %1083 = vmatpush1.bf16.msra.mxu0 %v1055
    %1084 = vmatprep.subr.bf16.mxu0 0
    %1085 = vmatpush1.bf16.msra.mxu0 %v1054
    %1086 = vmatprep.subr.bf16.mxu0 0
    %1087 = vmatpush2.bf16.msra.mxu0 0
    %1088 = vmatprep.subr.bf16.mxu0 0
    %1089 = vmatpush2.bf16.msra.mxu0 0
    %1090 = vmatprep.subr.bf16.mxu0 0
    %1091 = vmatpush2.bf16.msra.mxu0 0
    %1092 = vmatprep.subr.bf16.mxu0 0
    %1093 = vmatpush2.bf16.msra.mxu0 0
    %1094 = vmatprep.subr.bf16.mxu0 0
    %1095 = vmatpush2.bf16.msra.mxu0 0
    %1096 = vmatprep.subr.bf16.mxu0 0
    %1097 = vmatpush2.bf16.msra.mxu0 0
    %1098 = vmatprep.subr.bf16.mxu0 0
    %1099 = vmatpush2.bf16.msra.mxu0 0
    %1100 = vmatprep.subr.bf16.mxu0 0
    %1101 = vmatpush2.bf16.msra.mxu0 0
    %1102 = vmatprep.mubr.bf16.mxu0 0
    %1103 = vmatmul.mubr.bf16.gmra.mxu0 %v1005
    %v1104 = vpop.f32.mrf.mxu0
    %v1105 = vadd.f32 0.0, %v1104
    %v1106 = vpop.f32.mrf.mxu0
    %v1107 = vpop.f32.mrf.mxu0
    %v1108 = vadd.f32 0.0, %v1107
    %v1109 = vpop.f32.mrf.mxu0
    %1110 = vdwg.mxu0
    %v1111 = vadd.f32 %v1001, %v1105
    %v1112 = vadd.f32 %v1002, %v1108
    %v1113 = vld [vmem:[#allocation2 + $0x9] sm:$0xff]
    %v1114 = vld [vmem:[#allocation2 + $0x11] sm:$0xff]
    %v1115 = vpack.c.bf16 %v1114, %v1113
    %v1116 = vld [vmem:[%s373] sm:$0xf]
    %v1117 = vld [vmem:[%s373 + $0x4] sm:$0xf]
    %v1118 = vld [vmem:[%s373 + $0x8] sm:$0xf]
    %v1119 = vld [vmem:[%s373 + $0xc] sm:$0xf]
    %v1120 = vld [vmem:[%s373 + $0x10] sm:$0xf]
    %v1121 = vld [vmem:[%s373 + $0x14] sm:$0xf]
    %v1122 = vld [vmem:[%s373 + $0x18] sm:$0xf]
    %v1123 = vld [vmem:[%s373 + $0x1c] sm:$0xf]
    %v1124 = vld [vmem:[%s373 + $0x20] sm:$0xf]
    %v1125 = vld [vmem:[%s373 + $0x24] sm:$0xf]
    %v1126 = vld [vmem:[%s373 + $0x28] sm:$0xf]
    %v1127 = vld [vmem:[%s373 + $0x2c] sm:$0xf]
    %v1128 = vld [vmem:[%s373 + $0x30] sm:$0xf]
    %v1129 = vld [vmem:[%s373 + $0x34] sm:$0xf]
    %v1130 = vld [vmem:[%s373 + $0x38] sm:$0xf]
    %v1131 = vld [vmem:[%s373 + $0x3c] sm:$0xf]
    %v1148 = vunpack.c.l.b16 %v1116
    %v1149 = vunpack.c.l.b16 %v1117
    %v1150 = vunpack.c.l.b16 %v1118
    %v1151 = vunpack.c.l.b16 %v1119
    %v1152 = vunpack.c.l.b16 %v1120
    %v1153 = vunpack.c.l.b16 %v1121
    %v1154 = vunpack.c.l.b16 %v1122
    %v1155 = vunpack.c.l.b16 %v1123
    %v1156 = vunpack.c.l.b16 %v1124
    %v1157 = vunpack.c.l.b16 %v1125
    %v1158 = vunpack.c.l.b16 %v1126
    %v1159 = vunpack.c.l.b16 %v1127
    %v1160 = vunpack.c.l.b16 %v1128
    %v1161 = vunpack.c.l.b16 %v1129
    %v1162 = vunpack.c.l.b16 %v1130
    %v1163 = vunpack.c.l.b16 %v1131
    %v1164 = vpack.c.b16 %v1149, %v1148
    %v1165 = vpack.c.b16 %v1151, %v1150
    %v1166 = vpack.c.b16 %v1153, %v1152
    %v1167 = vpack.c.b16 %v1155, %v1154
    %v1168 = vpack.c.b16 %v1157, %v1156
    %v1169 = vpack.c.b16 %v1159, %v1158
    %v1170 = vpack.c.b16 %v1161, %v1160
    %v1171 = vpack.c.b16 %v1163, %v1162
    %1180 = vmatprep.subr.bf16.mxu0 0
    %1181 = vmatpush1.bf16.msra.mxu0 %v1171
    %1182 = vmatprep.subr.bf16.mxu0 0
    %1183 = vmatpush1.bf16.msra.mxu0 %v1170
    %1184 = vmatprep.subr.bf16.mxu0 0
    %1185 = vmatpush1.bf16.msra.mxu0 %v1169
    %1186 = vmatprep.subr.bf16.mxu0 0
    %1187 = vmatpush1.bf16.msra.mxu0 %v1168
    %1188 = vmatprep.subr.bf16.mxu0 0
    %1189 = vmatpush1.bf16.msra.mxu0 %v1167
    %1190 = vmatprep.subr.bf16.mxu0 0
    %1191 = vmatpush1.bf16.msra.mxu0 %v1166
    %1192 = vmatprep.subr.bf16.mxu0 0
    %1193 = vmatpush1.bf16.msra.mxu0 %v1165
    %1194 = vmatprep.subr.bf16.mxu0 0
    %1195 = vmatpush1.bf16.msra.mxu0 %v1164
    %1196 = vmatprep.subr.bf16.mxu0 0
    %1197 = vmatpush2.bf16.msra.mxu0 0
    %1198 = vmatprep.subr.bf16.mxu0 0
    %1199 = vmatpush2.bf16.msra.mxu0 0
    %1200 = vmatprep.subr.bf16.mxu0 0
    %1201 = vmatpush2.bf16.msra.mxu0 0
    %1202 = vmatprep.subr.bf16.mxu0 0
    %1203 = vmatpush2.bf16.msra.mxu0 0
    %1204 = vmatprep.subr.bf16.mxu0 0
    %1205 = vmatpush2.bf16.msra.mxu0 0
    %1206 = vmatprep.subr.bf16.mxu0 0
    %1207 = vmatpush2.bf16.msra.mxu0 0
    %1208 = vmatprep.subr.bf16.mxu0 0
    %1209 = vmatpush2.bf16.msra.mxu0 0
    %1210 = vmatprep.subr.bf16.mxu0 0
    %1211 = vmatpush2.bf16.msra.mxu0 0
    %1212 = vmatprep.mubr.bf16.mxu0 0
    %1213 = vmatmul.mubr.bf16.gmra.mxu0 %v1115
    %v1214 = vpop.f32.mrf.mxu0
    %v1215 = vadd.f32 0.0, %v1214
    %v1216 = vpop.f32.mrf.mxu0
    %v1217 = vpop.f32.mrf.mxu0
    %v1218 = vadd.f32 0.0, %v1217
    %v1219 = vpop.f32.mrf.mxu0
    %1220 = vdwg.mxu0
    %v1221 = vadd.f32 %v1111, %v1215
    %v1222 = vadd.f32 %v1112, %v1218
    %v1223 = vmax.f32 %v1221, 0.0
    %v1224 = vmax.f32 %v1222, 0.0
    %v1225 = vadd.f32 %v882, %v1223
    %v1226 = vadd.f32 %v883, %v1224
    %1227 = vst [vmem:[#allocation2 + $0x8] sm:$0xff] %v1225
    %1228 = vst [vmem:[#allocation2 + $0x10] sm:$0xff] %v1226
    %v1229 = vld [vmem:[%s487] sm:$0x1]
    %v1230 = vld [vmem:[#allocation2 + $0x7] sm:$0xff]
    %v1231 = vld [vmem:[#allocation2 + $0xf] sm:$0xff]
    %v1232 = vpack.c.bf16 %v1231, %v1230
    %v1233 = vld [vmem:[%s492] sm:$0xf]
    %v1234 = vld [vmem:[%s492 + $0x4] sm:$0xf]
    %v1235 = vld [vmem:[%s492 + $0x8] sm:$0xf]
    %v1236 = vld [vmem:[%s492 + $0xc] sm:$0xf]
    %v1237 = vld [vmem:[%s492 + $0x10] sm:$0xf]
    %v1238 = vld [vmem:[%s492 + $0x14] sm:$0xf]
    %v1239 = vld [vmem:[%s492 + $0x18] sm:$0xf]
    %v1240 = vld [vmem:[%s492 + $0x1c] sm:$0xf]
    %v1241 = vld [vmem:[%s492 + $0x20] sm:$0xf]
    %v1242 = vld [vmem:[%s492 + $0x24] sm:$0xf]
    %v1243 = vld [vmem:[%s492 + $0x28] sm:$0xf]
    %v1244 = vld [vmem:[%s492 + $0x2c] sm:$0xf]
    %v1245 = vld [vmem:[%s492 + $0x30] sm:$0xf]
    %v1246 = vld [vmem:[%s492 + $0x34] sm:$0xf]
    %v1247 = vld [vmem:[%s492 + $0x38] sm:$0xf]
    %v1248 = vld [vmem:[%s492 + $0x3c] sm:$0xf]
    %v1265 = vunpack.c.l.b16 %v1233
    %v1266 = vunpack.c.l.b16 %v1234
    %v1267 = vunpack.c.l.b16 %v1235
    %v1268 = vunpack.c.l.b16 %v1236
    %v1269 = vunpack.c.l.b16 %v1237
    %v1270 = vunpack.c.l.b16 %v1238
    %v1271 = vunpack.c.l.b16 %v1239
    %v1272 = vunpack.c.l.b16 %v1240
    %v1273 = vunpack.c.l.b16 %v1241
    %v1274 = vunpack.c.l.b16 %v1242
    %v1275 = vunpack.c.l.b16 %v1243
    %v1276 = vunpack.c.l.b16 %v1244
    %v1277 = vunpack.c.l.b16 %v1245
    %v1278 = vunpack.c.l.b16 %v1246
    %v1279 = vunpack.c.l.b16 %v1247
    %v1280 = vunpack.c.l.b16 %v1248
    %v1281 = vpack.c.b16 %v1266, %v1265
    %v1282 = vpack.c.b16 %v1268, %v1267
    %v1283 = vpack.c.b16 %v1270, %v1269
    %v1284 = vpack.c.b16 %v1272, %v1271
    %v1285 = vpack.c.b16 %v1274, %v1273
    %v1286 = vpack.c.b16 %v1276, %v1275
    %v1287 = vpack.c.b16 %v1278, %v1277
    %v1288 = vpack.c.b16 %v1280, %v1279
    %1297 = vmatprep.subr.bf16.mxu0 0
    %1298 = vmatpush1.bf16.msra.mxu0 %v1288
    %1299 = vmatprep.subr.bf16.mxu0 0
    %1300 = vmatpush1.bf16.msra.mxu0 %v1287
    %1301 = vmatprep.subr.bf16.mxu0 0
    %1302 = vmatpush1.bf16.msra.mxu0 %v1286
    %1303 = vmatprep.subr.bf16.mxu0 0
    %1304 = vmatpush1.bf16.msra.mxu0 %v1285
    %1305 = vmatprep.subr.bf16.mxu0 0
    %1306 = vmatpush1.bf16.msra.mxu0 %v1284
    %1307 = vmatprep.subr.bf16.mxu0 0
    %1308 = vmatpush1.bf16.msra.mxu0 %v1283
    %1309 = vmatprep.subr.bf16.mxu0 0
    %1310 = vmatpush1.bf16.msra.mxu0 %v1282
    %1311 = vmatprep.subr.bf16.mxu0 0
    %1312 = vmatpush1.bf16.msra.mxu0 %v1281
    %1313 = vmatprep.subr.bf16.mxu0 0
    %1314 = vmatpush2.bf16.msra.mxu0 0
    %1315 = vmatprep.subr.bf16.mxu0 0
    %1316 = vmatpush2.bf16.msra.mxu0 0
    %1317 = vmatprep.subr.bf16.mxu0 0
    %1318 = vmatpush2.bf16.msra.mxu0 0
    %1319 = vmatprep.subr.bf16.mxu0 0
    %1320 = vmatpush2.bf16.msra.mxu0 0
    %1321 = vmatprep.subr.bf16.mxu0 0
    %1322 = vmatpush2.bf16.msra.mxu0 0
    %1323 = vmatprep.subr.bf16.mxu0 0
    %1324 = vmatpush2.bf16.msra.mxu0 0
    %1325 = vmatprep.subr.bf16.mxu0 0
    %1326 = vmatpush2.bf16.msra.mxu0 0
    %1327 = vmatprep.subr.bf16.mxu0 0
    %1328 = vmatpush2.bf16.msra.mxu0 0
    %1329 = vmatprep.mubr.bf16.mxu0 0
    %1330 = vmatmul.mubr.bf16.gmra.mxu0 %v1232
    %v1331 = vpop.f32.mrf.mxu0
    %v1332 = vadd.f32 0.0, %v1331
    %v1333 = vpop.f32.mrf.mxu0
    %v1334 = vpop.f32.mrf.mxu0
    %v1335 = vadd.f32 0.0, %v1334
    %v1336 = vpop.f32.mrf.mxu0
    %1337 = vdwg.mxu0
    %v1339 = vlaneseq
    %v1340 = vshrl.u32 %v1339, 7
    %v1341 = vsub.s32 0, %v1340
    %v1342 = vrot.slane %v1229, %v1341
    %v1344 = vadd.f32 %v1342, %v1332
    %v1345 = vadd.f32 %v1342, %v1335
    %v1346 = vld [vmem:[#allocation2 + $0x8] sm:$0xff]
    %v1347 = vld [vmem:[#allocation2 + $0x10] sm:$0xff]
    %v1348 = vpack.c.bf16 %v1347, %v1346
    %v1349 = vld [vmem:[%s609] sm:$0xf]
    %v1350 = vld [vmem:[%s609 + $0x4] sm:$0xf]
    %v1351 = vld [vmem:[%s609 + $0x8] sm:$0xf]
    %v1352 = vld [vmem:[%s609 + $0xc] sm:$0xf]
    %v1353 = vld [vmem:[%s609 + $0x10] sm:$0xf]
    %v1354 = vld [vmem:[%s609 + $0x14] sm:$0xf]
    %v1355 = vld [vmem:[%s609 + $0x18] sm:$0xf]
    %v1356 = vld [vmem:[%s609 + $0x1c] sm:$0xf]
    %v1357 = vld [vmem:[%s609 + $0x20] sm:$0xf]
    %v1358 = vld [vmem:[%s609 + $0x24] sm:$0xf]
    %v1359 = vld [vmem:[%s609 + $0x28] sm:$0xf]
    %v1360 = vld [vmem:[%s609 + $0x2c] sm:$0xf]
    %v1361 = vld [vmem:[%s609 + $0x30] sm:$0xf]
    %v1362 = vld [vmem:[%s609 + $0x34] sm:$0xf]
    %v1363 = vld [vmem:[%s609 + $0x38] sm:$0xf]
    %v1364 = vld [vmem:[%s609 + $0x3c] sm:$0xf]
    %v1381 = vunpack.c.l.b16 %v1349
    %v1382 = vunpack.c.l.b16 %v1350
    %v1383 = vunpack.c.l.b16 %v1351
    %v1384 = vunpack.c.l.b16 %v1352
    %v1385 = vunpack.c.l.b16 %v1353
    %v1386 = vunpack.c.l.b16 %v1354
    %v1387 = vunpack.c.l.b16 %v1355
    %v1388 = vunpack.c.l.b16 %v1356
    %v1389 = vunpack.c.l.b16 %v1357
    %v1390 = vunpack.c.l.b16 %v1358
    %v1391 = vunpack.c.l.b16 %v1359
    %v1392 = vunpack.c.l.b16 %v1360
    %v1393 = vunpack.c.l.b16 %v1361
    %v1394 = vunpack.c.l.b16 %v1362
    %v1395 = vunpack.c.l.b16 %v1363
    %v1396 = vunpack.c.l.b16 %v1364
    %v1397 = vpack.c.b16 %v1382, %v1381
    %v1398 = vpack.c.b16 %v1384, %v1383
    %v1399 = vpack.c.b16 %v1386, %v1385
    %v1400 = vpack.c.b16 %v1388, %v1387
    %v1401 = vpack.c.b16 %v1390, %v1389
    %v1402 = vpack.c.b16 %v1392, %v1391
    %v1403 = vpack.c.b16 %v1394, %v1393
    %v1404 = vpack.c.b16 %v1396, %v1395
    %1413 = vmatprep.subr.bf16.mxu0 0
    %1414 = vmatpush1.bf16.msra.mxu0 %v1404
    %1415 = vmatprep.subr.bf16.mxu0 0
    %1416 = vmatpush1.bf16.msra.mxu0 %v1403
    %1417 = vmatprep.subr.bf16.mxu0 0
    %1418 = vmatpush1.bf16.msra.mxu0 %v1402
    %1419 = vmatprep.subr.bf16.mxu0 0
    %1420 = vmatpush1.bf16.msra.mxu0 %v1401
    %1421 = vmatprep.subr.bf16.mxu0 0
    %1422 = vmatpush1.bf16.msra.mxu0 %v1400
    %1423 = vmatprep.subr.bf16.mxu0 0
    %1424 = vmatpush1.bf16.msra.mxu0 %v1399
    %1425 = vmatprep.subr.bf16.mxu0 0
    %1426 = vmatpush1.bf16.msra.mxu0 %v1398
    %1427 = vmatprep.subr.bf16.mxu0 0
    %1428 = vmatpush1.bf16.msra.mxu0 %v1397
    %1429 = vmatprep.subr.bf16.mxu0 0
    %1430 = vmatpush2.bf16.msra.mxu0 0
    %1431 = vmatprep.subr.bf16.mxu0 0
    %1432 = vmatpush2.bf16.msra.mxu0 0
    %1433 = vmatprep.subr.bf16.mxu0 0
    %1434 = vmatpush2.bf16.msra.mxu0 0
    %1435 = vmatprep.subr.bf16.mxu0 0
    %1436 = vmatpush2.bf16.msra.mxu0 0
    %1437 = vmatprep.subr.bf16.mxu0 0
    %1438 = vmatpush2.bf16.msra.mxu0 0
    %1439 = vmatprep.subr.bf16.mxu0 0
    %1440 = vmatpush2.bf16.msra.mxu0 0
    %1441 = vmatprep.subr.bf16.mxu0 0
    %1442 = vmatpush2.bf16.msra.mxu0 0
    %1443 = vmatprep.subr.bf16.mxu0 0
    %1444 = vmatpush2.bf16.msra.mxu0 0
    %1445 = vmatprep.mubr.bf16.mxu0 0
    %1446 = vmatmul.mubr.bf16.gmra.mxu0 %v1348
    %v1447 = vpop.f32.mrf.mxu0
    %v1448 = vadd.f32 0.0, %v1447
    %v1449 = vpop.f32.mrf.mxu0
    %v1450 = vpop.f32.mrf.mxu0
    %v1451 = vadd.f32 0.0, %v1450
    %v1452 = vpop.f32.mrf.mxu0
    %1453 = vdwg.mxu0
    %v1454 = vadd.f32 %v1344, %v1448
    %v1455 = vadd.f32 %v1345, %v1451
    %v1456 = vld [vmem:[#allocation2 + $0x9] sm:$0xff]
    %v1457 = vld [vmem:[#allocation2 + $0x11] sm:$0xff]
    %v1458 = vpack.c.bf16 %v1457, %v1456
    %v1459 = vld [vmem:[%s720] sm:$0xf]
    %v1460 = vld [vmem:[%s720 + $0x4] sm:$0xf]
    %v1461 = vld [vmem:[%s720 + $0x8] sm:$0xf]
    %v1462 = vld [vmem:[%s720 + $0xc] sm:$0xf]
    %v1463 = vld [vmem:[%s720 + $0x10] sm:$0xf]
    %v1464 = vld [vmem:[%s720 + $0x14] sm:$0xf]
    %v1465 = vld [vmem:[%s720 + $0x18] sm:$0xf]
    %v1466 = vld [vmem:[%s720 + $0x1c] sm:$0xf]
    %v1467 = vld [vmem:[%s720 + $0x20] sm:$0xf]
    %v1468 = vld [vmem:[%s720 + $0x24] sm:$0xf]
    %v1469 = vld [vmem:[%s720 + $0x28] sm:$0xf]
    %v1470 = vld [vmem:[%s720 + $0x2c] sm:$0xf]
    %v1471 = vld [vmem:[%s720 + $0x30] sm:$0xf]
    %v1472 = vld [vmem:[%s720 + $0x34] sm:$0xf]
    %v1473 = vld [vmem:[%s720 + $0x38] sm:$0xf]
    %v1474 = vld [vmem:[%s720 + $0x3c] sm:$0xf]
    %v1491 = vunpack.c.l.b16 %v1459
    %v1492 = vunpack.c.l.b16 %v1460
    %v1493 = vunpack.c.l.b16 %v1461
    %v1494 = vunpack.c.l.b16 %v1462
    %v1495 = vunpack.c.l.b16 %v1463
    %v1496 = vunpack.c.l.b16 %v1464
    %v1497 = vunpack.c.l.b16 %v1465
    %v1498 = vunpack.c.l.b16 %v1466
    %v1499 = vunpack.c.l.b16 %v1467
    %v1500 = vunpack.c.l.b16 %v1468
    %v1501 = vunpack.c.l.b16 %v1469
    %v1502 = vunpack.c.l.b16 %v1470
    %v1503 = vunpack.c.l.b16 %v1471
    %v1504 = vunpack.c.l.b16 %v1472
    %v1505 = vunpack.c.l.b16 %v1473
    %v1506 = vunpack.c.l.b16 %v1474
    %v1507 = vpack.c.b16 %v1492, %v1491
    %v1508 = vpack.c.b16 %v1494, %v1493
    %v1509 = vpack.c.b16 %v1496, %v1495
    %v1510 = vpack.c.b16 %v1498, %v1497
    %v1511 = vpack.c.b16 %v1500, %v1499
    %v1512 = vpack.c.b16 %v1502, %v1501
    %v1513 = vpack.c.b16 %v1504, %v1503
    %v1514 = vpack.c.b16 %v1506, %v1505
    %1523 = vmatprep.subr.bf16.mxu0 0
    %1524 = vmatpush1.bf16.msra.mxu0 %v1514
    %1525 = vmatprep.subr.bf16.mxu0 0
    %1526 = vmatpush1.bf16.msra.mxu0 %v1513
    %1527 = vmatprep.subr.bf16.mxu0 0
    %1528 = vmatpush1.bf16.msra.mxu0 %v1512
    %1529 = vmatprep.subr.bf16.mxu0 0
    %1530 = vmatpush1.bf16.msra.mxu0 %v1511
    %1531 = vmatprep.subr.bf16.mxu0 0
    %1532 = vmatpush1.bf16.msra.mxu0 %v1510
    %1533 = vmatprep.subr.bf16.mxu0 0
    %1534 = vmatpush1.bf16.msra.mxu0 %v1509
    %1535 = vmatprep.subr.bf16.mxu0 0
    %1536 = vmatpush1.bf16.msra.mxu0 %v1508
    %1537 = vmatprep.subr.bf16.mxu0 0
    %1538 = vmatpush1.bf16.msra.mxu0 %v1507
    %1539 = vmatprep.subr.bf16.mxu0 0
    %1540 = vmatpush2.bf16.msra.mxu0 0
    %1541 = vmatprep.subr.bf16.mxu0 0
    %1542 = vmatpush2.bf16.msra.mxu0 0
    %1543 = vmatprep.subr.bf16.mxu0 0
    %1544 = vmatpush2.bf16.msra.mxu0 0
    %1545 = vmatprep.subr.bf16.mxu0 0
    %1546 = vmatpush2.bf16.msra.mxu0 0
    %1547 = vmatprep.subr.bf16.mxu0 0
    %1548 = vmatpush2.bf16.msra.mxu0 0
    %1549 = vmatprep.subr.bf16.mxu0 0
    %1550 = vmatpush2.bf16.msra.mxu0 0
    %1551 = vmatprep.subr.bf16.mxu0 0
    %1552 = vmatpush2.bf16.msra.mxu0 0
    %1553 = vmatprep.subr.bf16.mxu0 0
    %1554 = vmatpush2.bf16.msra.mxu0 0
    %1555 = vmatprep.mubr.bf16.mxu0 0
    %1556 = vmatmul.mubr.bf16.gmra.mxu0 %v1458
    %v1557 = vpop.f32.mrf.mxu0
    %v1558 = vadd.f32 0.0, %v1557
    %v1559 = vpop.f32.mrf.mxu0
    %v1560 = vpop.f32.mrf.mxu0
    %v1561 = vadd.f32 0.0, %v1560
    %v1562 = vpop.f32.mrf.mxu0
    %1563 = vdwg.mxu0
    %v1564 = vadd.f32 %v1454, %v1558
    %v1565 = vadd.f32 %v1455, %v1561
    %v1566 = vmax.f32 %v1564, 0.0
    %v1567 = vmax.f32 %v1565, 0.0
    %v1568 = vadd.f32 %v1225, %v1566
    %v1569 = vadd.f32 %v1226, %v1567
    %s1570 = scalar_lea.vmem [#allocation9], 16
    %1571 = vst [vmem:[%s1570] sm:$0xff] %v1568
    %1572 = vst [vmem:[%s1570 + $0x8] sm:$0xff] %v1569
    // Predicated region
    $region34: #{tpu_custom_call.1} parent=1 // pred_check
      _
    $region35: #{tpu_custom_call.1} parent=1 // pred_check_branch
      %1574 = sbr.rel (0) target = $region37
    $region36: #{tpu_custom_call.1} parent=1 // pred_region
      %s1576 = ssub.s32 512, 512
      %1577 = vsyncadd [#allocation5], %s1576
      %s1578 = sshll.u32 [#allocation9], 4
      %s1579 = int_to_ptr.vmem [resolvable:$true] %s1578
      %1584 = dma.vmem_to_hbm [thread:$0]  %s1579, 512, %s5, [#allocation5], 128, 128, 8
    $region37: #{tpu_custom_call.1} parent=1 // pred_fallthru
      _
    // Predicated region
    $region38: #{tpu_custom_call.1} parent=1 // pred_check
      _
    $region39: #{tpu_custom_call.1} parent=1 // pred_check_branch
      %1586 = sbr.rel (0) target = $region41
    $region40: #{tpu_custom_call.1} parent=1 // pred_region
      %1587 = dma.done [#allocation5], 512
    $region41: #{tpu_custom_call.1} parent=1 // pred_fallthru
      _
    %1588 = vsyncpa [#allocation4], 1
    %1589 = vsyncpa [#allocation7], 1
    %1590 = vsyncpa [#allocation5], 1

</llo_original>
